<compile_context>
chip_gen: v7x
topology: tpu7x:2x2x1
jax: 0.10.0
libtpu: 0.0.40
codegen_flags: <defaults>
</compile_context>

<pallas_src>
import numpy as np
import jax
import jax.numpy as jnp
from jax.experimental import pallas as pl
from jax.experimental.pallas import tpu as pltpu

# Residual requires in_channels == hid_channels for the skip-add to be valid.
N, H, W, CIN, CHID, K = 2, 16, 16, 8, 8, 3
PAD = (K - 1) // 2
HW = H * W
NHW = N * H * W
EPS = 1e-5
KKC = K * K * CHID          # 72 im2col rows
KKC_PAD = 80                # padded to a multiple of 16 (bf16 sublane tile)


def _boundary_masks():
    """Static 0/1 validity masks: one row per (kh, kw) tap, columns = (n, h, w)."""
    hh, ww = np.meshgrid(np.arange(H), np.arange(W), indexing="ij")
    rows = []
    for kh in range(K):
        for kw in range(K):
            dh, dw = kh - PAD, kw - PAD
            valid = ((hh + dh >= 0) & (hh + dh < H) &
                     (ww + dw >= 0) & (ww + dw < W))
            rows.append(np.tile(valid.reshape(-1), N))
    return np.stack(rows, axis=0).astype(np.float32)          # (K*K, NHW)


_MASKS = _boundary_masks()    # compile-time constant, 18 KB


def residual_kernel(x_ref, w_ref, mask_ref, params_ref, out_ref, p_ref):
    """x_ref:      (N, CIN, HW)       f32 input activations
       w_ref:      (2, CHID, KKC_PAD) bf16 packed, transposed, zero-padded weights
       mask_ref:   (K*K, NHW)         f32 static 0/1 boundary masks
       params_ref: (CHID, 4)          f32 columns [gamma1 | beta1 | gamma2 | beta2]
       out_ref:    (N, CHID, HW)      f32 output, NCHW order (lane-dense HW=256)
       p_ref:      (KKC_PAD, NHW)     f32 scratch: im2col of conv1, then conv2
    """
    inv_cnt = 1.0 / NHW

    def batchnorm(y, gamma, beta):
        # fused one-pass stats along lanes; training-mode biased variance
        mean = jnp.sum(y, axis=-1, keepdims=True) * inv_cnt            # (C, 1)
        meansq = jnp.sum(y * y, axis=-1, keepdims=True) * inv_cnt      # (C, 1)
        var = jnp.maximum(meansq - mean * mean, 0.0)                   # clamp >= 0
        return (y - mean) * (gamma * jax.lax.rsqrt(var + EPS)) + beta

    def build_patches(src):
        # im2col of a (C, NHW) flat activation via XLU lane rolls + 0/1 mask
        # multiplies; every store is an aligned full-sublane/full-lane f32 vst.
        for kh in range(K):
            for kw in range(K):
                dh, dw = kh - PAD, kw - PAD
                s = dh * W + dw                       # flat spatial shift
                t = kh * K + kw
                row = t * CHID                        # 8-sublane aligned offset
                if s == 0:                            # centre tap: always valid
                    p_ref[row:row + CHID, :] = src
                else:
                    tap = pltpu.roll(src, (-s) % NHW, axis=1)
                    p_ref[row:row + CHID, :] = tap * mask_ref[t:t + 1, :]

    def conv(widx):
        # one (CHID, 80) @ (80, NHW) bf16 MXU matmul, f32 accumulate
        return jnp.dot(w_ref[widx], p_ref[...].astype(jnp.bfloat16),
                       preferred_element_type=jnp.float32)

    # zero the padded im2col rows once (weight pad cols are zero too, but keep
    # uninitialized VMEM / NaNs out of the MXU operand)
    p_ref[KKC:KKC_PAD, :] = jnp.zeros((KKC_PAD - KKC, NHW), jnp.float32)

    # flatten x to (CIN, N*HW): lane-dim concat of per-batch (CIN, HW) slabs
    x_flat = jnp.concatenate([x_ref[n] for n in range(N)], axis=-1)

    # ---- conv1 -> BN1 -> ReLU ---------------------------------------------
    build_patches(x_flat)
    h1 = jnp.maximum(
        batchnorm(conv(0), params_ref[:, 0:1], params_ref[:, 1:2]), 0.0)

    # ---- conv2 -> BN2 -------------------------------------------------------
    build_patches(h1)                                  # overwrites shared scratch
    res = batchnorm(conv(1), params_ref[:, 2:3], params_ref[:, 3:4])

    # ---- skip-add + ReLU, stored directly in NCHW order ---------------------
    for n in range(N):
        out_ref[n] = jnp.maximum(x_ref[n] + res[:, n * HW:(n + 1) * HW], 0.0)


@jax.jit
def residual_forward(x_nchw, w1, w2, g1, b1, g2, b2):
    # (N, CIN, H, W) -> (N, CIN, HW): free reshape, no transpose/pad/stack HLOs
    x = x_nchw.astype(jnp.float32).reshape(N, CIN, HW)

    # pack weights as (2, Cout, KKC_PAD): (tap, cin) row ordering matching the
    # in-kernel im2col, transposed, zero-padded 72->80, bf16 for the MXU.
    w1p = jnp.pad(w1.reshape(K * K * CIN, CHID).T, ((0, 0), (0, KKC_PAD - KKC)))
    w2p = jnp.pad(w2.reshape(K * K * CHID, CHID).T, ((0, 0), (0, KKC_PAD - KKC)))
    w_packed = jnp.stack([w1p, w2p], axis=0).astype(jnp.bfloat16)

    # gamma/beta lane-packed into one tiny tile: columns [g1, b1, g2, b2]
    params = jnp.stack([g1, b1, g2, b2], axis=1).astype(jnp.float32)   # (CHID, 4)

    masks = jnp.asarray(_MASKS)                       # baked constant, 18 KB

    vmem = pl.BlockSpec(memory_space=pltpu.MemorySpace.VMEM)
    out = pl.pallas_call(
        residual_kernel,
        out_shape=jax.ShapeDtypeStruct((N, CHID, HW), jnp.float32),
        in_specs=[vmem, vmem, vmem, vmem],
        out_specs=vmem,
        scratch_shapes=[pltpu.VMEM((KKC_PAD, NHW), jnp.float32)],
        # NOTE: grid-less on purpose at this size; for larger N/H/W block the
        # NHW (lane) dimension with a grid + dimension_semantics=("parallel",)
        # to use both v7x TensorCores, sizing blocks for the scoped-VMEM limit.
    )(x, w_packed, masks, params)

    # (N, CHID, HW) -> (N, CHID, H, W): free reshape (kernel already wrote NCHW)
    return out.reshape(N, CHID, H, W)


def residual_reference(x_nchw, w1, w2, g1, b1, g2, b2):
    # pure-JAX f32 reference with identical (training-mode) BN math
    x = x_nchw.astype(jnp.float32)

    def conv(src, wk):
        return jax.lax.conv_general_dilated(
            src, wk, window_strides=(1, 1), padding="SAME",
            dimension_numbers=("NCHW", "HWIO", "NCHW"))

    def bn(y, g, b):
        mean = y.mean(axis=(0, 2, 3), keepdims=True)
        var = ((y - mean) ** 2).mean(axis=(0, 2, 3), keepdims=True)
        return (y - mean) * g.reshape(1, -1, 1, 1) / jnp.sqrt(var + EPS) \
            + b.reshape(1, -1, 1, 1)

    h1 = jax.nn.relu(bn(conv(x, w1), g1, b1))
    res = bn(conv(h1, w2), g2, b2)
    return jax.nn.relu(x + res)


if __name__ == "__main__":
    key = jax.random.PRNGKey(0)
    kx, k1, k2, kg1, kb1, kg2, kb2 = jax.random.split(key, 7)

    # deterministic synthetic parameters (shapes from Residual.__init__)
    x = jax.random.normal(kx, (N, CIN, H, W), jnp.float32)             # NCHW input
    w1 = jax.random.normal(k1, (K, K, CIN, CHID), jnp.float32) * 0.1   # conv1 weight
    w2 = jax.random.normal(k2, (K, K, CHID, CHID), jnp.float32) * 0.1  # conv2 weight
    g1 = 1.0 + 0.1 * jax.random.normal(kg1, (CHID,), jnp.float32)      # bn1 gamma
    b1 = 0.1 * jax.random.normal(kb1, (CHID,), jnp.float32)            # bn1 beta
    g2 = 1.0 + 0.1 * jax.random.normal(kg2, (CHID,), jnp.float32)      # bn2 gamma
    b2 = 0.1 * jax.random.normal(kb2, (CHID,), jnp.float32)            # bn2 beta

    out = residual_forward(x, w1, w2, g1, b1, g2, b2)
    out = jax.block_until_ready(out)

    ref = residual_reference(x, w1, w2, g1, b1, g2, b2)
    assert out.shape == (N, CHID, H, W)
    err = jnp.max(jnp.abs(out - ref))
    # Tolerance reflects bf16 MXU operands (per-conv ~2^-9 relative rounding,
    # compounded through two BN layers); BN/accumulation/skip math stays f32.
    assert jnp.allclose(out, ref, atol=5e-2, rtol=2e-2), f"max abs err {err}"

    print("KERNEL_OK")
</pallas_src>

<mosaic_0001>
module attributes {stable_mosaic.version = 11 : i64} {
  func.func @residual_kernel(%arg0: memref<2x8x256xf32, #tpu.memory_space<vmem>>, %arg1: memref<2x8x80xbf16, #tpu.memory_space<vmem>>, %arg2: memref<9x512xf32, #tpu.memory_space<vmem>>, %arg3: memref<8x4xf32, #tpu.memory_space<vmem>>, %arg4: memref<2x8x256xf32, #tpu.memory_space<vmem>>, %arg5: memref<80x512xf32, #tpu.memory_space<vmem>>) attributes {dimension_semantics = [], scalar_prefetch = 0 : i64, scratch_operands = 1 : i64, tpu.core_type = #tpu.core_type<tc>} {
    %cst = arith.constant 0.000000e+00 : f32
    %0 = vector.broadcast %cst : f32 to vector<8x512xf32>
    %c72 = arith.constant 72 : index
    %c0 = arith.constant 0 : index
    %1 = vector.load %arg5[%c72, %c0] : memref<80x512xf32, #tpu.memory_space<vmem>>, vector<8x512xf32>
    tpu.vector_store %arg5[%c72, %c0], %0 {strides = array<i32>} : memref<80x512xf32, #tpu.memory_space<vmem>>, vector<8x512xf32>,
    %c0_0 = arith.constant 0 : index
    %c0_1 = arith.constant 0 : index
    %c0_2 = arith.constant 0 : index
    %2 = vector.load %arg0[%c0_0, %c0_1, %c0_2] : memref<2x8x256xf32, #tpu.memory_space<vmem>>, vector<1x8x256xf32>
    %3 = vector.shape_cast %2 : vector<1x8x256xf32> to vector<8x256xf32>
    %c1 = arith.constant 1 : index
    %c0_3 = arith.constant 0 : index
    %c0_4 = arith.constant 0 : index
    %4 = vector.load %arg0[%c1, %c0_3, %c0_4] : memref<2x8x256xf32, #tpu.memory_space<vmem>>, vector<1x8x256xf32>
    %5 = vector.shape_cast %4 : vector<1x8x256xf32> to vector<8x256xf32>
    %6 = tpu.concatenate %3, %5 in 1 : vector<8x256xf32>, vector<8x256xf32> -> vector<8x512xf32>
    %c17_i32 = arith.constant 17 : i32
    %7 = tpu.dynamic_rotate %6 by %c17_i32 dim 1 : vector<8x512xf32>, i32 -> vector<8x512xf32>
    %c0_5 = arith.constant 0 : index
    %c0_6 = arith.constant 0 : index
    %8 = vector.load %arg2[%c0_5, %c0_6] : memref<9x512xf32, #tpu.memory_space<vmem>>, vector<1x512xf32>
    %9 = vector.broadcast %8 : vector<1x512xf32> to vector<8x512xf32>
    %10 = arith.mulf %7, %9 : vector<8x512xf32>
    %c0_7 = arith.constant 0 : index
    %c0_8 = arith.constant 0 : index
    %11 = vector.load %arg5[%c0_7, %c0_8] : memref<80x512xf32, #tpu.memory_space<vmem>>, vector<8x512xf32>
    tpu.vector_store %arg5[%c0_7, %c0_8], %10 {strides = array<i32>} : memref<80x512xf32, #tpu.memory_space<vmem>>, vector<8x512xf32>,
    %c16_i32 = arith.constant 16 : i32
    %12 = tpu.dynamic_rotate %6 by %c16_i32 dim 1 : vector<8x512xf32>, i32 -> vector<8x512xf32>
    %c1_9 = arith.constant 1 : index
    %c0_10 = arith.constant 0 : index
    %13 = vector.load %arg2[%c1_9, %c0_10] : memref<9x512xf32, #tpu.memory_space<vmem>>, vector<1x512xf32>
    %14 = vector.broadcast %13 : vector<1x512xf32> to vector<8x512xf32>
    %15 = arith.mulf %12, %14 : vector<8x512xf32>
    %c8 = arith.constant 8 : index
    %c0_11 = arith.constant 0 : index
    %16 = vector.load %arg5[%c8, %c0_11] : memref<80x512xf32, #tpu.memory_space<vmem>>, vector<8x512xf32>
    tpu.vector_store %arg5[%c8, %c0_11], %15 {strides = array<i32>} : memref<80x512xf32, #tpu.memory_space<vmem>>, vector<8x512xf32>,
    %c15_i32 = arith.constant 15 : i32
    %17 = tpu.dynamic_rotate %6 by %c15_i32 dim 1 : vector<8x512xf32>, i32 -> vector<8x512xf32>
    %c2 = arith.constant 2 : index
    %c0_12 = arith.constant 0 : index
    %18 = vector.load %arg2[%c2, %c0_12] : memref<9x512xf32, #tpu.memory_space<vmem>>, vector<1x512xf32>
    %19 = vector.broadcast %18 : vector<1x512xf32> to vector<8x512xf32>
    %20 = arith.mulf %17, %19 : vector<8x512xf32>
    %c16 = arith.constant 16 : index
    %c0_13 = arith.constant 0 : index
    %21 = vector.load %arg5[%c16, %c0_13] : memref<80x512xf32, #tpu.memory_space<vmem>>, vector<8x512xf32>
    tpu.vector_store %arg5[%c16, %c0_13], %20 {strides = array<i32>} : memref<80x512xf32, #tpu.memory_space<vmem>>, vector<8x512xf32>,
    %c1_i32 = arith.constant 1 : i32
    %22 = tpu.dynamic_rotate %6 by %c1_i32 dim 1 : vector<8x512xf32>, i32 -> vector<8x512xf32>
    %c3 = arith.constant 3 : index
    %c0_14 = arith.constant 0 : index
    %23 = vector.load %arg2[%c3, %c0_14] : memref<9x512xf32, #tpu.memory_space<vmem>>, vector<1x512xf32>
    %24 = vector.broadcast %23 : vector<1x512xf32> to vector<8x512xf32>
    %25 = arith.mulf %22, %24 : vector<8x512xf32>
    %c24 = arith.constant 24 : index
    %c0_15 = arith.constant 0 : index
    %26 = vector.load %arg5[%c24, %c0_15] : memref<80x512xf32, #tpu.memory_space<vmem>>, vector<8x512xf32>
    tpu.vector_store %arg5[%c24, %c0_15], %25 {strides = array<i32>} : memref<80x512xf32, #tpu.memory_space<vmem>>, vector<8x512xf32>,
    %c32 = arith.constant 32 : index
    %c0_16 = arith.constant 0 : index
    %27 = vector.load %arg5[%c32, %c0_16] : memref<80x512xf32, #tpu.memory_space<vmem>>, vector<8x512xf32>
    tpu.vector_store %arg5[%c32, %c0_16], %6 {strides = array<i32>} : memref<80x512xf32, #tpu.memory_space<vmem>>, vector<8x512xf32>,
    %c511_i32 = arith.constant 511 : i32
    %28 = tpu.dynamic_rotate %6 by %c511_i32 dim 1 : vector<8x512xf32>, i32 -> vector<8x512xf32>
    %c5 = arith.constant 5 : index
    %c0_17 = arith.constant 0 : index
    %29 = vector.load %arg2[%c5, %c0_17] : memref<9x512xf32, #tpu.memory_space<vmem>>, vector<1x512xf32>
    %30 = vector.broadcast %29 : vector<1x512xf32> to vector<8x512xf32>
    %31 = arith.mulf %28, %30 : vector<8x512xf32>
    %c40 = arith.constant 40 : index
    %c0_18 = arith.constant 0 : index
    %32 = vector.load %arg5[%c40, %c0_18] : memref<80x512xf32, #tpu.memory_space<vmem>>, vector<8x512xf32>
    tpu.vector_store %arg5[%c40, %c0_18], %31 {strides = array<i32>} : memref<80x512xf32, #tpu.memory_space<vmem>>, vector<8x512xf32>,
    %c497_i32 = arith.constant 497 : i32
    %33 = tpu.dynamic_rotate %6 by %c497_i32 dim 1 : vector<8x512xf32>, i32 -> vector<8x512xf32>
    %c6 = arith.constant 6 : index
    %c0_19 = arith.constant 0 : index
    %34 = vector.load %arg2[%c6, %c0_19] : memref<9x512xf32, #tpu.memory_space<vmem>>, vector<1x512xf32>
    %35 = vector.broadcast %34 : vector<1x512xf32> to vector<8x512xf32>
    %36 = arith.mulf %33, %35 : vector<8x512xf32>
    %c48 = arith.constant 48 : index
    %c0_20 = arith.constant 0 : index
    %37 = vector.load %arg5[%c48, %c0_20] : memref<80x512xf32, #tpu.memory_space<vmem>>, vector<8x512xf32>
    tpu.vector_store %arg5[%c48, %c0_20], %36 {strides = array<i32>} : memref<80x512xf32, #tpu.memory_space<vmem>>, vector<8x512xf32>,
    %c496_i32 = arith.constant 496 : i32
    %38 = tpu.dynamic_rotate %6 by %c496_i32 dim 1 : vector<8x512xf32>, i32 -> vector<8x512xf32>
    %c7 = arith.constant 7 : index
    %c0_21 = arith.constant 0 : index
    %39 = vector.load %arg2[%c7, %c0_21] : memref<9x512xf32, #tpu.memory_space<vmem>>, vector<1x512xf32>
    %40 = vector.broadcast %39 : vector<1x512xf32> to vector<8x512xf32>
    %41 = arith.mulf %38, %40 : vector<8x512xf32>
    %c56 = arith.constant 56 : index
    %c0_22 = arith.constant 0 : index
    %42 = vector.load %arg5[%c56, %c0_22] : memref<80x512xf32, #tpu.memory_space<vmem>>, vector<8x512xf32>
    tpu.vector_store %arg5[%c56, %c0_22], %41 {strides = array<i32>} : memref<80x512xf32, #tpu.memory_space<vmem>>, vector<8x512xf32>,
    %c495_i32 = arith.constant 495 : i32
    %43 = tpu.dynamic_rotate %6 by %c495_i32 dim 1 : vector<8x512xf32>, i32 -> vector<8x512xf32>
    %c8_23 = arith.constant 8 : index
    %c0_24 = arith.constant 0 : index
    %44 = vector.load %arg2[%c8_23, %c0_24] : memref<9x512xf32, #tpu.memory_space<vmem>>, vector<1x512xf32>
    %45 = vector.broadcast %44 : vector<1x512xf32> to vector<8x512xf32>
    %46 = arith.mulf %43, %45 : vector<8x512xf32>
    %c64 = arith.constant 64 : index
    %c0_25 = arith.constant 0 : index
    %47 = vector.load %arg5[%c64, %c0_25] : memref<80x512xf32, #tpu.memory_space<vmem>>, vector<8x512xf32>
    tpu.vector_store %arg5[%c64, %c0_25], %46 {strides = array<i32>} : memref<80x512xf32, #tpu.memory_space<vmem>>, vector<8x512xf32>,
    %c0_26 = arith.constant 0 : index
    %c0_27 = arith.constant 0 : index
    %c0_28 = arith.constant 0 : index
    %48 = vector.load %arg1[%c0_26, %c0_27, %c0_28] : memref<2x8x80xbf16, #tpu.memory_space<vmem>>, vector<1x8x80xbf16>
    %49 = vector.shape_cast %48 : vector<1x8x80xbf16> to vector<8x80xbf16>
    %c0_29 = arith.constant 0 : index
    %c0_30 = arith.constant 0 : index
    %50 = vector.load %arg5[%c0_29, %c0_30] : memref<80x512xf32, #tpu.memory_space<vmem>>, vector<80x512xf32>
    %51 = arith.truncf %50 : vector<80x512xf32> to vector<80x512xbf16>
    %cst_31 = arith.constant dense<0.000000e+00> : vector<8x512xf32>
    %52 = tpu.matmul %49, %51, %cst_31 {dimension_numbers = #tpu.dot_dimension_numbers<[1], [0], [0], [1], [0, 0, 1, 1], [], []>} : vector<8x80xbf16>, vector<80x512xbf16>, vector<8x512xf32> -> vector<8x512xf32>
    %c0_32 = arith.constant 0 : index
    %c0_33 = arith.constant 0 : index
    %53 = vector.load %arg3[%c0_32, %c0_33] : memref<8x4xf32, #tpu.memory_space<vmem>>, vector<8x1xf32>
    %c0_34 = arith.constant 0 : index
    %c1_35 = arith.constant 1 : index
    %54 = vector.load %arg3[%c0_34, %c1_35] : memref<8x4xf32, #tpu.memory_space<vmem>>, vector<8x1xf32>
    %cst_36 = arith.constant dense<0.000000e+00> : vector<8xf32>
    %55 = vector.multi_reduction <add>, %52, %cst_36 [1] : vector<8x512xf32> to vector<8xf32>
    %56 = vector.shape_cast %55 : vector<8xf32> to vector<8x1xf32>
    %cst_37 = arith.constant 0.001953125 : f32
    %57 = vector.broadcast %cst_37 : f32 to vector<8x1xf32>
    %58 = arith.mulf %56, %57 : vector<8x1xf32>
    %59 = arith.mulf %52, %52 : vector<8x512xf32>
    %cst_38 = arith.constant dense<0.000000e+00> : vector<8xf32>
    %60 = vector.multi_reduction <add>, %59, %cst_38 [1] : vector<8x512xf32> to vector<8xf32>
    %61 = vector.shape_cast %60 : vector<8xf32> to vector<8x1xf32>
    %cst_39 = arith.constant 0.001953125 : f32
    %62 = vector.broadcast %cst_39 : f32 to vector<8x1xf32>
    %63 = arith.mulf %61, %62 : vector<8x1xf32>
    %64 = arith.mulf %58, %58 : vector<8x1xf32>
    %65 = arith.subf %63, %64 : vector<8x1xf32>
    %cst_40 = arith.constant 0.000000e+00 : f32
    %66 = vector.broadcast %cst_40 : f32 to vector<8x1xf32>
    %67 = arith.maximumf %65, %66 : vector<8x1xf32>
    %68 = vector.broadcast %58 : vector<8x1xf32> to vector<8x512xf32>
    %69 = arith.subf %52, %68 : vector<8x512xf32>
    %cst_41 = arith.constant 9.99999974E-6 : f32
    %70 = vector.broadcast %cst_41 : f32 to vector<8x1xf32>
    %71 = arith.addf %67, %70 : vector<8x1xf32>
    %72 = math.rsqrt %71 : vector<8x1xf32>
    %73 = arith.mulf %53, %72 : vector<8x1xf32>
    %74 = vector.broadcast %73 : vector<8x1xf32> to vector<8x512xf32>
    %75 = arith.mulf %69, %74 : vector<8x512xf32>
    %76 = vector.broadcast %54 : vector<8x1xf32> to vector<8x512xf32>
    %77 = arith.addf %75, %76 : vector<8x512xf32>
    %cst_42 = arith.constant 0.000000e+00 : f32
    %78 = vector.broadcast %cst_42 : f32 to vector<8x512xf32>
    %79 = arith.maximumf %77, %78 : vector<8x512xf32>
    %c17_i32_43 = arith.constant 17 : i32
    %80 = tpu.dynamic_rotate %79 by %c17_i32_43 dim 1 : vector<8x512xf32>, i32 -> vector<8x512xf32>
    %c0_44 = arith.constant 0 : index
    %c0_45 = arith.constant 0 : index
    %81 = vector.load %arg2[%c0_44, %c0_45] : memref<9x512xf32, #tpu.memory_space<vmem>>, vector<1x512xf32>
    %82 = vector.broadcast %81 : vector<1x512xf32> to vector<8x512xf32>
    %83 = arith.mulf %80, %82 : vector<8x512xf32>
    %c0_46 = arith.constant 0 : index
    %c0_47 = arith.constant 0 : index
    %84 = vector.load %arg5[%c0_46, %c0_47] : memref<80x512xf32, #tpu.memory_space<vmem>>, vector<8x512xf32>
    tpu.vector_store %arg5[%c0_46, %c0_47], %83 {strides = array<i32>} : memref<80x512xf32, #tpu.memory_space<vmem>>, vector<8x512xf32>,
    %c16_i32_48 = arith.constant 16 : i32
    %85 = tpu.dynamic_rotate %79 by %c16_i32_48 dim 1 : vector<8x512xf32>, i32 -> vector<8x512xf32>
    %c1_49 = arith.constant 1 : index
    %c0_50 = arith.constant 0 : index
    %86 = vector.load %arg2[%c1_49, %c0_50] : memref<9x512xf32, #tpu.memory_space<vmem>>, vector<1x512xf32>
    %87 = vector.broadcast %86 : vector<1x512xf32> to vector<8x512xf32>
    %88 = arith.mulf %85, %87 : vector<8x512xf32>
    %c8_51 = arith.constant 8 : index
    %c0_52 = arith.constant 0 : index
    %89 = vector.load %arg5[%c8_51, %c0_52] : memref<80x512xf32, #tpu.memory_space<vmem>>, vector<8x512xf32>
    tpu.vector_store %arg5[%c8_51, %c0_52], %88 {strides = array<i32>} : memref<80x512xf32, #tpu.memory_space<vmem>>, vector<8x512xf32>,
    %c15_i32_53 = arith.constant 15 : i32
    %90 = tpu.dynamic_rotate %79 by %c15_i32_53 dim 1 : vector<8x512xf32>, i32 -> vector<8x512xf32>
    %c2_54 = arith.constant 2 : index
    %c0_55 = arith.constant 0 : index
    %91 = vector.load %arg2[%c2_54, %c0_55] : memref<9x512xf32, #tpu.memory_space<vmem>>, vector<1x512xf32>
    %92 = vector.broadcast %91 : vector<1x512xf32> to vector<8x512xf32>
    %93 = arith.mulf %90, %92 : vector<8x512xf32>
    %c16_56 = arith.constant 16 : index
    %c0_57 = arith.constant 0 : index
    %94 = vector.load %arg5[%c16_56, %c0_57] : memref<80x512xf32, #tpu.memory_space<vmem>>, vector<8x512xf32>
    tpu.vector_store %arg5[%c16_56, %c0_57], %93 {strides = array<i32>} : memref<80x512xf32, #tpu.memory_space<vmem>>, vector<8x512xf32>,
    %c1_i32_58 = arith.constant 1 : i32
    %95 = tpu.dynamic_rotate %79 by %c1_i32_58 dim 1 : vector<8x512xf32>, i32 -> vector<8x512xf32>
    %c3_59 = arith.constant 3 : index
    %c0_60 = arith.constant 0 : index
    %96 = vector.load %arg2[%c3_59, %c0_60] : memref<9x512xf32, #tpu.memory_space<vmem>>, vector<1x512xf32>
    %97 = vector.broadcast %96 : vector<1x512xf32> to vector<8x512xf32>
    %98 = arith.mulf %95, %97 : vector<8x512xf32>
    %c24_61 = arith.constant 24 : index
    %c0_62 = arith.constant 0 : index
    %99 = vector.load %arg5[%c24_61, %c0_62] : memref<80x512xf32, #tpu.memory_space<vmem>>, vector<8x512xf32>
    tpu.vector_store %arg5[%c24_61, %c0_62], %98 {strides = array<i32>} : memref<80x512xf32, #tpu.memory_space<vmem>>, vector<8x512xf32>,
    %c32_63 = arith.constant 32 : index
    %c0_64 = arith.constant 0 : index
    %100 = vector.load %arg5[%c32_63, %c0_64] : memref<80x512xf32, #tpu.memory_space<vmem>>, vector<8x512xf32>
    tpu.vector_store %arg5[%c32_63, %c0_64], %79 {strides = array<i32>} : memref<80x512xf32, #tpu.memory_space<vmem>>, vector<8x512xf32>,
    %c511_i32_65 = arith.constant 511 : i32
    %101 = tpu.dynamic_rotate %79 by %c511_i32_65 dim 1 : vector<8x512xf32>, i32 -> vector<8x512xf32>
    %c5_66 = arith.constant 5 : index
    %c0_67 = arith.constant 0 : index
    %102 = vector.load %arg2[%c5_66, %c0_67] : memref<9x512xf32, #tpu.memory_space<vmem>>, vector<1x512xf32>
    %103 = vector.broadcast %102 : vector<1x512xf32> to vector<8x512xf32>
    %104 = arith.mulf %101, %103 : vector<8x512xf32>
    %c40_68 = arith.constant 40 : index
    %c0_69 = arith.constant 0 : index
    %105 = vector.load %arg5[%c40_68, %c0_69] : memref<80x512xf32, #tpu.memory_space<vmem>>, vector<8x512xf32>
    tpu.vector_store %arg5[%c40_68, %c0_69], %104 {strides = array<i32>} : memref<80x512xf32, #tpu.memory_space<vmem>>, vector<8x512xf32>,
    %c497_i32_70 = arith.constant 497 : i32
    %106 = tpu.dynamic_rotate %79 by %c497_i32_70 dim 1 : vector<8x512xf32>, i32 -> vector<8x512xf32>
    %c6_71 = arith.constant 6 : index
    %c0_72 = arith.constant 0 : index
    %107 = vector.load %arg2[%c6_71, %c0_72] : memref<9x512xf32, #tpu.memory_space<vmem>>, vector<1x512xf32>
    %108 = vector.broadcast %107 : vector<1x512xf32> to vector<8x512xf32>
    %109 = arith.mulf %106, %108 : vector<8x512xf32>
    %c48_73 = arith.constant 48 : index
    %c0_74 = arith.constant 0 : index
    %110 = vector.load %arg5[%c48_73, %c0_74] : memref<80x512xf32, #tpu.memory_space<vmem>>, vector<8x512xf32>
    tpu.vector_store %arg5[%c48_73, %c0_74], %109 {strides = array<i32>} : memref<80x512xf32, #tpu.memory_space<vmem>>, vector<8x512xf32>,
    %c496_i32_75 = arith.constant 496 : i32
    %111 = tpu.dynamic_rotate %79 by %c496_i32_75 dim 1 : vector<8x512xf32>, i32 -> vector<8x512xf32>
    %c7_76 = arith.constant 7 : index
    %c0_77 = arith.constant 0 : index
    %112 = vector.load %arg2[%c7_76, %c0_77] : memref<9x512xf32, #tpu.memory_space<vmem>>, vector<1x512xf32>
    %113 = vector.broadcast %112 : vector<1x512xf32> to vector<8x512xf32>
    %114 = arith.mulf %111, %113 : vector<8x512xf32>
    %c56_78 = arith.constant 56 : index
    %c0_79 = arith.constant 0 : index
    %115 = vector.load %arg5[%c56_78, %c0_79] : memref<80x512xf32, #tpu.memory_space<vmem>>, vector<8x512xf32>
    tpu.vector_store %arg5[%c56_78, %c0_79], %114 {strides = array<i32>} : memref<80x512xf32, #tpu.memory_space<vmem>>, vector<8x512xf32>,
    %c495_i32_80 = arith.constant 495 : i32
    %116 = tpu.dynamic_rotate %79 by %c495_i32_80 dim 1 : vector<8x512xf32>, i32 -> vector<8x512xf32>
    %c8_81 = arith.constant 8 : index
    %c0_82 = arith.constant 0 : index
    %117 = vector.load %arg2[%c8_81, %c0_82] : memref<9x512xf32, #tpu.memory_space<vmem>>, vector<1x512xf32>
    %118 = vector.broadcast %117 : vector<1x512xf32> to vector<8x512xf32>
    %119 = arith.mulf %116, %118 : vector<8x512xf32>
    %c64_83 = arith.constant 64 : index
    %c0_84 = arith.constant 0 : index
    %120 = vector.load %arg5[%c64_83, %c0_84] : memref<80x512xf32, #tpu.memory_space<vmem>>, vector<8x512xf32>
    tpu.vector_store %arg5[%c64_83, %c0_84], %119 {strides = array<i32>} : memref<80x512xf32, #tpu.memory_space<vmem>>, vector<8x512xf32>,
    %c1_85 = arith.constant 1 : index
    %c0_86 = arith.constant 0 : index
    %c0_87 = arith.constant 0 : index
    %121 = vector.load %arg1[%c1_85, %c0_86, %c0_87] : memref<2x8x80xbf16, #tpu.memory_space<vmem>>, vector<1x8x80xbf16>
    %122 = vector.shape_cast %121 : vector<1x8x80xbf16> to vector<8x80xbf16>
    %c0_88 = arith.constant 0 : index
    %c0_89 = arith.constant 0 : index
    %123 = vector.load %arg5[%c0_88, %c0_89] : memref<80x512xf32, #tpu.memory_space<vmem>>, vector<80x512xf32>
    %124 = arith.truncf %123 : vector<80x512xf32> to vector<80x512xbf16>
    %cst_90 = arith.constant dense<0.000000e+00> : vector<8x512xf32>
    %125 = tpu.matmul %122, %124, %cst_90 {dimension_numbers = #tpu.dot_dimension_numbers<[1], [0], [0], [1], [0, 0, 1, 1], [], []>} : vector<8x80xbf16>, vector<80x512xbf16>, vector<8x512xf32> -> vector<8x512xf32>
    %c0_91 = arith.constant 0 : index
    %c2_92 = arith.constant 2 : index
    %126 = vector.load %arg3[%c0_91, %c2_92] : memref<8x4xf32, #tpu.memory_space<vmem>>, vector<8x1xf32>
    %c0_93 = arith.constant 0 : index
    %c3_94 = arith.constant 3 : index
    %127 = vector.load %arg3[%c0_93, %c3_94] : memref<8x4xf32, #tpu.memory_space<vmem>>, vector<8x1xf32>
    %cst_95 = arith.constant dense<0.000000e+00> : vector<8xf32>
    %128 = vector.multi_reduction <add>, %125, %cst_95 [1] : vector<8x512xf32> to vector<8xf32>
    %129 = vector.shape_cast %128 : vector<8xf32> to vector<8x1xf32>
    %cst_96 = arith.constant 0.001953125 : f32
    %130 = vector.broadcast %cst_96 : f32 to vector<8x1xf32>
    %131 = arith.mulf %129, %130 : vector<8x1xf32>
    %132 = arith.mulf %125, %125 : vector<8x512xf32>
    %cst_97 = arith.constant dense<0.000000e+00> : vector<8xf32>
    %133 = vector.multi_reduction <add>, %132, %cst_97 [1] : vector<8x512xf32> to vector<8xf32>
    %134 = vector.shape_cast %133 : vector<8xf32> to vector<8x1xf32>
    %cst_98 = arith.constant 0.001953125 : f32
    %135 = vector.broadcast %cst_98 : f32 to vector<8x1xf32>
    %136 = arith.mulf %134, %135 : vector<8x1xf32>
    %137 = arith.mulf %131, %131 : vector<8x1xf32>
    %138 = arith.subf %136, %137 : vector<8x1xf32>
    %cst_99 = arith.constant 0.000000e+00 : f32
    %139 = vector.broadcast %cst_99 : f32 to vector<8x1xf32>
    %140 = arith.maximumf %138, %139 : vector<8x1xf32>
    %141 = vector.broadcast %131 : vector<8x1xf32> to vector<8x512xf32>
    %142 = arith.subf %125, %141 : vector<8x512xf32>
    %cst_100 = arith.constant 9.99999974E-6 : f32
    %143 = vector.broadcast %cst_100 : f32 to vector<8x1xf32>
    %144 = arith.addf %140, %143 : vector<8x1xf32>
    %145 = math.rsqrt %144 : vector<8x1xf32>
    %146 = arith.mulf %126, %145 : vector<8x1xf32>
    %147 = vector.broadcast %146 : vector<8x1xf32> to vector<8x512xf32>
    %148 = arith.mulf %142, %147 : vector<8x512xf32>
    %149 = vector.broadcast %127 : vector<8x1xf32> to vector<8x512xf32>
    %150 = arith.addf %148, %149 : vector<8x512xf32>
    %c0_101 = arith.constant 0 : index
    %c0_102 = arith.constant 0 : index
    %c0_103 = arith.constant 0 : index
    %151 = vector.load %arg0[%c0_101, %c0_102, %c0_103] : memref<2x8x256xf32, #tpu.memory_space<vmem>>, vector<1x8x256xf32>
    %152 = vector.shape_cast %151 : vector<1x8x256xf32> to vector<8x256xf32>
    %153 = vector.extract_strided_slice %150 {offsets = [0, 0], sizes = [8, 256], strides = [1, 1]} : vector<8x512xf32> to vector<8x256xf32>
    %154 = arith.addf %152, %153 : vector<8x256xf32>
    %cst_104 = arith.constant 0.000000e+00 : f32
    %155 = vector.broadcast %cst_104 : f32 to vector<8x256xf32>
    %156 = arith.maximumf %154, %155 : vector<8x256xf32>
    %c0_105 = arith.constant 0 : index
    %c0_106 = arith.constant 0 : index
    %c0_107 = arith.constant 0 : index
    %157 = vector.load %arg4[%c0_105, %c0_106, %c0_107] : memref<2x8x256xf32, #tpu.memory_space<vmem>>, vector<1x8x256xf32>
    %158 = vector.shape_cast %157 : vector<1x8x256xf32> to vector<8x256xf32>
    %159 = vector.shape_cast %156 : vector<8x256xf32> to vector<1x8x256xf32>
    tpu.vector_store %arg4[%c0_105, %c0_106, %c0_107], %159 {strides = array<i32>} : memref<2x8x256xf32, #tpu.memory_space<vmem>>, vector<1x8x256xf32>,
    %c1_108 = arith.constant 1 : index
    %c0_109 = arith.constant 0 : index
    %c0_110 = arith.constant 0 : index
    %160 = vector.load %arg0[%c1_108, %c0_109, %c0_110] : memref<2x8x256xf32, #tpu.memory_space<vmem>>, vector<1x8x256xf32>
    %161 = vector.shape_cast %160 : vector<1x8x256xf32> to vector<8x256xf32>
    %162 = vector.extract_strided_slice %150 {offsets = [0, 256], sizes = [8, 256], strides = [1, 1]} : vector<8x512xf32> to vector<8x256xf32>
    %163 = arith.addf %161, %162 : vector<8x256xf32>
    %cst_111 = arith.constant 0.000000e+00 : f32
    %164 = vector.broadcast %cst_111 : f32 to vector<8x256xf32>
    %165 = arith.maximumf %163, %164 : vector<8x256xf32>
    %c1_112 = arith.constant 1 : index
    %c0_113 = arith.constant 0 : index
    %c0_114 = arith.constant 0 : index
    %166 = vector.load %arg4[%c1_112, %c0_113, %c0_114] : memref<2x8x256xf32, #tpu.memory_space<vmem>>, vector<1x8x256xf32>
    %167 = vector.shape_cast %166 : vector<1x8x256xf32> to vector<8x256xf32>
    %168 = vector.shape_cast %165 : vector<8x256xf32> to vector<1x8x256xf32>
    tpu.vector_store %arg4[%c1_112, %c0_113, %c0_114], %168 {strides = array<i32>} : memref<2x8x256xf32, #tpu.memory_space<vmem>>, vector<1x8x256xf32>,
    return
  }
}

</mosaic_0001>

<llo_original>
// kernel: residual_forward.1
$region0: #{residual_forward.1}
  #allocation0 [shape = 'u32[]', space=smem, size = 0x4, offset = 0x4, fixed_abs, tag = 'smem constant byte address 0x4 - core index']
  #allocation1 [shape = 'u32[144,128]{1,0:T(1,128)}', space=vmem, size = 0x12000, scoped, tag = 'internal scratch']
  #allocation2 [shape = 'f32[80,512]{1,0:T(8,128)}', space=vmem, size = 0x28000, scoped, tag = 'scratch operand']
  %s0 = inlined_call_operand.vmem [shape: f32[2,8,256], index: 0, kind: input, shape index: {}]
  %s1 = inlined_call_operand.vmem [shape: bf16[2,8,80], index: 1, kind: input, shape index: {}]
  %s2 = inlined_call_operand.vmem [shape: f32[9,512], index: 2, kind: input, shape index: {}]
  %s3 = inlined_call_operand.vmem [shape: f32[8,4], index: 3, kind: input, shape index: {}]
  %s4 = inlined_call_operand.vmem [shape: f32[2,8,256], index: 4, kind: output, shape index: {}]
  %s5 = sld [smem:[#allocation0]]
  $region26: #{residual_forward.1} parent=0
    _
  %s7 = ssub.s32 1, %s5
  %s8 = scalar_select 0, %s7, %s5
  // Predicated region
  $region2: #{residual_forward.1} parent=0 // pred_check
    _
  $region3: #{residual_forward.1} parent=0 // pred_check_branch
    %10 = sbr.rel (0) target = $region5
  $region4: #{residual_forward.1} parent=0 // pred_region
    _
  $region5: #{residual_forward.1} parent=0 // pred_fallthru
    _
  // Predicated region
  $region6: #{residual_forward.1} parent=0 // pred_check
    _
  $region7: #{residual_forward.1} parent=0 // pred_check_branch
    %12 = sbr.rel (0) target = $region9
  $region8: #{residual_forward.1} parent=0 // pred_region
    _
  $region9: #{residual_forward.1} parent=0 // pred_fallthru
    _
  // Predicated region
  $region10: #{residual_forward.1} parent=0 // pred_check
    _
  $region11: #{residual_forward.1} parent=0 // pred_check_branch
    %14 = sbr.rel (0) target = $region13
  $region12: #{residual_forward.1} parent=0 // pred_region
    _
  $region13: #{residual_forward.1} parent=0 // pred_fallthru
    _
  // Predicated region
  $region14: #{residual_forward.1} parent=0 // pred_check
    _
  $region15: #{residual_forward.1} parent=0 // pred_check_branch
    %16 = sbr.rel (0) target = $region17
  $region16: #{residual_forward.1} parent=0 // pred_region
    _
  $region17: #{residual_forward.1} parent=0 // pred_fallthru
    _
  %18 = vst [vmem:[#allocation2 + $0x120] sm:$0xff] 0.0
  %19 = vst [vmem:[#allocation2 + $0x128] sm:$0xff] 0.0
  %20 = vst [vmem:[#allocation2 + $0x130] sm:$0xff] 0.0
  %21 = vst [vmem:[#allocation2 + $0x138] sm:$0xff] 0.0
  %v22 = vld [vmem:[%s0] sm:$0xff]
  %v23 = vld [vmem:[%s0 + $0x8] sm:$0xff]
  %s24 = scalar_lea.vmem %s0, 16
  %v25 = vld [vmem:[%s24] sm:$0xff]
  %v26 = vld [vmem:[%s24 + $0x8] sm:$0xff]
  %27 = vrot.lane.b32.xlu0 %v22, 17
  %v28 = vpop.permute.xlu0 %27
  %29 = vrot.lane.b32.xlu0 %v23, 17
  %v30 = vpop.permute.xlu0 %29
  %31 = vrot.lane.b32.xlu0 %v25, 17
  %v32 = vpop.permute.xlu0 %31
  %33 = vrot.lane.b32.xlu0 %v26, 17
  %v34 = vpop.permute.xlu0 %33
  %v35 = vlaneseq
  %v36 = vand.u32 %v35, 127
  %vm37 = vcmp.lt.s32.totalorder %v36, 17
  %v38 = vsel %vm37, %v32, %v34
  %v39 = vsel %vm37, %v30, %v32
  %v40 = vsel %vm37, %v28, %v30
  %v41 = vsel %vm37, %v34, %v28
  %v42 = vld [vmem:[%s2] ss:$8 sm:$0xf]
  %v44 = vlaneseq
  %v45 = vshrl.u32 %v44, 7
  %v46 = vsub.s32 0, %v45
  %v47 = vrot.slane %v42, %v46
  %v48 = vlaneseq
  %v49 = vshrl.u32 %v48, 7
  %v50 = vsub.s32 1, %v49
  %v51 = vrot.slane %v42, %v50
  %v52 = vlaneseq
  %v53 = vshrl.u32 %v52, 7
  %v54 = vsub.s32 2, %v53
  %v55 = vrot.slane %v42, %v54
  %v56 = vlaneseq
  %v57 = vshrl.u32 %v56, 7
  %v58 = vsub.s32 3, %v57
  %v59 = vrot.slane %v42, %v58
  %v64 = vmul.f32 %v41, %v47
  %v65 = vmul.f32 %v40, %v51
  %v66 = vmul.f32 %v39, %v55
  %v67 = vmul.f32 %v38, %v59
  %68 = vst [vmem:[#allocation2] sm:$0xff] %v64
  %69 = vst [vmem:[#allocation2 + $0x8] sm:$0xff] %v65
  %70 = vst [vmem:[#allocation2 + $0x10] sm:$0xff] %v66
  %71 = vst [vmem:[#allocation2 + $0x18] sm:$0xff] %v67
  %72 = vrot.lane.b32.xlu0 %v22, 16
  %v73 = vpop.permute.xlu0 %72
  %74 = vrot.lane.b32.xlu0 %v23, 16
  %v75 = vpop.permute.xlu0 %74
  %76 = vrot.lane.b32.xlu0 %v25, 16
  %v77 = vpop.permute.xlu0 %76
  %78 = vrot.lane.b32.xlu0 %v26, 16
  %v79 = vpop.permute.xlu0 %78
  %vm80 = vcmp.lt.s32.totalorder %v36, 16
  %v81 = vsel %vm80, %v77, %v79
  %v82 = vsel %vm80, %v75, %v77
  %v83 = vsel %vm80, %v73, %v75
  %v84 = vsel %vm80, %v79, %v73
  %s85 = scalar_lea.vmem %s2, 1
  %v86 = vld [vmem:[%s85] ss:$8 sm:$0xf]
  %v88 = vlaneseq
  %v89 = vshrl.u32 %v88, 7
  %v90 = vsub.s32 0, %v89
  %v91 = vrot.slane %v86, %v90
  %v92 = vlaneseq
  %v93 = vshrl.u32 %v92, 7
  %v94 = vsub.s32 1, %v93
  %v95 = vrot.slane %v86, %v94
  %v96 = vlaneseq
  %v97 = vshrl.u32 %v96, 7
  %v98 = vsub.s32 2, %v97
  %v99 = vrot.slane %v86, %v98
  %v100 = vlaneseq
  %v101 = vshrl.u32 %v100, 7
  %v102 = vsub.s32 3, %v101
  %v103 = vrot.slane %v86, %v102
  %v108 = vmul.f32 %v84, %v91
  %v109 = vmul.f32 %v83, %v95
  %v110 = vmul.f32 %v82, %v99
  %v111 = vmul.f32 %v81, %v103
  %112 = vst [vmem:[#allocation2 + $0x20] sm:$0xff] %v108
  %113 = vst [vmem:[#allocation2 + $0x28] sm:$0xff] %v109
  %114 = vst [vmem:[#allocation2 + $0x30] sm:$0xff] %v110
  %115 = vst [vmem:[#allocation2 + $0x38] sm:$0xff] %v111
  %116 = vrot.lane.b32.xlu0 %v22, 15
  %v117 = vpop.permute.xlu0 %116
  %118 = vrot.lane.b32.xlu0 %v23, 15
  %v119 = vpop.permute.xlu0 %118
  %120 = vrot.lane.b32.xlu0 %v25, 15
  %v121 = vpop.permute.xlu0 %120
  %122 = vrot.lane.b32.xlu0 %v26, 15
  %v123 = vpop.permute.xlu0 %122
  %vm124 = vcmp.lt.s32.totalorder %v36, 15
  %v125 = vsel %vm124, %v121, %v123
  %v126 = vsel %vm124, %v119, %v121
  %v127 = vsel %vm124, %v117, %v119
  %v128 = vsel %vm124, %v123, %v117
  %s129 = scalar_lea.vmem %s2, 2
  %v130 = vld [vmem:[%s129] ss:$8 sm:$0xf]
  %v132 = vlaneseq
  %v133 = vshrl.u32 %v132, 7
  %v134 = vsub.s32 0, %v133
  %v135 = vrot.slane %v130, %v134
  %v136 = vlaneseq
  %v137 = vshrl.u32 %v136, 7
  %v138 = vsub.s32 1, %v137
  %v139 = vrot.slane %v130, %v138
  %v140 = vlaneseq
  %v141 = vshrl.u32 %v140, 7
  %v142 = vsub.s32 2, %v141
  %v143 = vrot.slane %v130, %v142
  %v144 = vlaneseq
  %v145 = vshrl.u32 %v144, 7
  %v146 = vsub.s32 3, %v145
  %v147 = vrot.slane %v130, %v146
  %v152 = vmul.f32 %v128, %v135
  %v153 = vmul.f32 %v127, %v139
  %v154 = vmul.f32 %v126, %v143
  %v155 = vmul.f32 %v125, %v147
  %156 = vst [vmem:[#allocation2 + $0x40] sm:$0xff] %v152
  %157 = vst [vmem:[#allocation2 + $0x48] sm:$0xff] %v153
  %158 = vst [vmem:[#allocation2 + $0x50] sm:$0xff] %v154
  %159 = vst [vmem:[#allocation2 + $0x58] sm:$0xff] %v155
  %160 = vrot.lane.b32.xlu0 %v22, 1
  %v161 = vpop.permute.xlu0 %160
  %162 = vrot.lane.b32.xlu0 %v23, 1
  %v163 = vpop.permute.xlu0 %162
  %164 = vrot.lane.b32.xlu0 %v25, 1
  %v165 = vpop.permute.xlu0 %164
  %166 = vrot.lane.b32.xlu0 %v26, 1
  %v167 = vpop.permute.xlu0 %166
  %vm168 = vcmp.lt.s32.totalorder %v36, 1
  %v169 = vsel %vm168, %v165, %v167
  %v170 = vsel %vm168, %v163, %v165
  %v171 = vsel %vm168, %v161, %v163
  %v172 = vsel %vm168, %v167, %v161
  %s173 = scalar_lea.vmem %s2, 3
  %v174 = vld [vmem:[%s173] ss:$8 sm:$0xf]
  %v176 = vlaneseq
  %v177 = vshrl.u32 %v176, 7
  %v178 = vsub.s32 0, %v177
  %v179 = vrot.slane %v174, %v178
  %v180 = vlaneseq
  %v181 = vshrl.u32 %v180, 7
  %v182 = vsub.s32 1, %v181
  %v183 = vrot.slane %v174, %v182
  %v184 = vlaneseq
  %v185 = vshrl.u32 %v184, 7
  %v186 = vsub.s32 2, %v185
  %v187 = vrot.slane %v174, %v186
  %v188 = vlaneseq
  %v189 = vshrl.u32 %v188, 7
  %v190 = vsub.s32 3, %v189
  %v191 = vrot.slane %v174, %v190
  %v196 = vmul.f32 %v172, %v179
  %v197 = vmul.f32 %v171, %v183
  %v198 = vmul.f32 %v170, %v187
  %v199 = vmul.f32 %v169, %v191
  %200 = vst [vmem:[#allocation2 + $0x60] sm:$0xff] %v196
  %201 = vst [vmem:[#allocation2 + $0x68] sm:$0xff] %v197
  %202 = vst [vmem:[#allocation2 + $0x70] sm:$0xff] %v198
  %203 = vst [vmem:[#allocation2 + $0x78] sm:$0xff] %v199
  %204 = vst [vmem:[#allocation2 + $0x80] sm:$0xff] %v22
  %205 = vst [vmem:[#allocation2 + $0x88] sm:$0xff] %v23
  %206 = vst [vmem:[#allocation2 + $0x90] sm:$0xff] %v25
  %207 = vst [vmem:[#allocation2 + $0x98] sm:$0xff] %v26
  %208 = vrot.lane.b32.xlu0 %v22, 127
  %v209 = vpop.permute.xlu0 %208
  %210 = vrot.lane.b32.xlu0 %v23, 127
  %v211 = vpop.permute.xlu0 %210
  %212 = vrot.lane.b32.xlu0 %v25, 127
  %v213 = vpop.permute.xlu0 %212
  %214 = vrot.lane.b32.xlu0 %v26, 127
  %v215 = vpop.permute.xlu0 %214
  %vm216 = vcmp.lt.s32.totalorder %v36, 127
  %v217 = vsel %vm216, %v213, %v215
  %v218 = vsel %vm216, %v211, %v213
  %v219 = vsel %vm216, %v209, %v211
  %v220 = vsel %vm216, %v215, %v209
  %s221 = scalar_lea.vmem %s2, 5
  %v222 = vld [vmem:[%s221] ss:$8 sm:$0xf]
  %v224 = vlaneseq
  %v225 = vshrl.u32 %v224, 7
  %v226 = vsub.s32 0, %v225
  %v227 = vrot.slane %v222, %v226
  %v228 = vlaneseq
  %v229 = vshrl.u32 %v228, 7
  %v230 = vsub.s32 1, %v229
  %v231 = vrot.slane %v222, %v230
  %v232 = vlaneseq
  %v233 = vshrl.u32 %v232, 7
  %v234 = vsub.s32 2, %v233
  %v235 = vrot.slane %v222, %v234
  %v236 = vlaneseq
  %v237 = vshrl.u32 %v236, 7
  %v238 = vsub.s32 3, %v237
  %v239 = vrot.slane %v222, %v238
  %v244 = vmul.f32 %v219, %v227
  %v245 = vmul.f32 %v218, %v231
  %v246 = vmul.f32 %v217, %v235
  %v247 = vmul.f32 %v220, %v239
  %248 = vst [vmem:[#allocation2 + $0xa0] sm:$0xff] %v244
  %249 = vst [vmem:[#allocation2 + $0xa8] sm:$0xff] %v245
  %250 = vst [vmem:[#allocation2 + $0xb0] sm:$0xff] %v246
  %251 = vst [vmem:[#allocation2 + $0xb8] sm:$0xff] %v247
  %252 = vrot.lane.b32.xlu0 %v22, 113
  %v253 = vpop.permute.xlu0 %252
  %254 = vrot.lane.b32.xlu0 %v23, 113
  %v255 = vpop.permute.xlu0 %254
  %256 = vrot.lane.b32.xlu0 %v25, 113
  %v257 = vpop.permute.xlu0 %256
  %258 = vrot.lane.b32.xlu0 %v26, 113
  %v259 = vpop.permute.xlu0 %258
  %vm260 = vcmp.lt.s32.totalorder %v36, 113
  %v261 = vsel %vm260, %v257, %v259
  %v262 = vsel %vm260, %v255, %v257
  %v263 = vsel %vm260, %v253, %v255
  %v264 = vsel %vm260, %v259, %v253
  %s265 = scalar_lea.vmem %s2, 6
  %v266 = vld [vmem:[%s265] ss:$8 sm:$0xf]
  %v268 = vlaneseq
  %v269 = vshrl.u32 %v268, 7
  %v270 = vsub.s32 0, %v269
  %v271 = vrot.slane %v266, %v270
  %v272 = vlaneseq
  %v273 = vshrl.u32 %v272, 7
  %v274 = vsub.s32 1, %v273
  %v275 = vrot.slane %v266, %v274
  %v276 = vlaneseq
  %v277 = vshrl.u32 %v276, 7
  %v278 = vsub.s32 2, %v277
  %v279 = vrot.slane %v266, %v278
  %v280 = vlaneseq
  %v281 = vshrl.u32 %v280, 7
  %v282 = vsub.s32 3, %v281
  %v283 = vrot.slane %v266, %v282
  %v288 = vmul.f32 %v263, %v271
  %v289 = vmul.f32 %v262, %v275
  %v290 = vmul.f32 %v261, %v279
  %v291 = vmul.f32 %v264, %v283
  %292 = vst [vmem:[#allocation2 + $0xc0] sm:$0xff] %v288
  %293 = vst [vmem:[#allocation2 + $0xc8] sm:$0xff] %v289
  %294 = vst [vmem:[#allocation2 + $0xd0] sm:$0xff] %v290
  %295 = vst [vmem:[#allocation2 + $0xd8] sm:$0xff] %v291
  %296 = vrot.lane.b32.xlu0 %v22, 112
  %v297 = vpop.permute.xlu0 %296
  %298 = vrot.lane.b32.xlu0 %v23, 112
  %v299 = vpop.permute.xlu0 %298
  %300 = vrot.lane.b32.xlu0 %v25, 112
  %v301 = vpop.permute.xlu0 %300
  %302 = vrot.lane.b32.xlu0 %v26, 112
  %v303 = vpop.permute.xlu0 %302
  %vm304 = vcmp.lt.s32.totalorder %v36, 112
  %v305 = vsel %vm304, %v301, %v303
  %v306 = vsel %vm304, %v299, %v301
  %v307 = vsel %vm304, %v297, %v299
  %v308 = vsel %vm304, %v303, %v297
  %s309 = scalar_lea.vmem %s2, 7
  %v310 = vld [vmem:[%s309] ss:$8 sm:$0xf]
  %v312 = vlaneseq
  %v313 = vshrl.u32 %v312, 7
  %v314 = vsub.s32 0, %v313
  %v315 = vrot.slane %v310, %v314
  %v316 = vlaneseq
  %v317 = vshrl.u32 %v316, 7
  %v318 = vsub.s32 1, %v317
  %v319 = vrot.slane %v310, %v318
  %v320 = vlaneseq
  %v321 = vshrl.u32 %v320, 7
  %v322 = vsub.s32 2, %v321
  %v323 = vrot.slane %v310, %v322
  %v324 = vlaneseq
  %v325 = vshrl.u32 %v324, 7
  %v326 = vsub.s32 3, %v325
  %v327 = vrot.slane %v310, %v326
  %v332 = vmul.f32 %v307, %v315
  %v333 = vmul.f32 %v306, %v319
  %v334 = vmul.f32 %v305, %v323
  %v335 = vmul.f32 %v308, %v327
  %336 = vst [vmem:[#allocation2 + $0xe0] sm:$0xff] %v332
  %337 = vst [vmem:[#allocation2 + $0xe8] sm:$0xff] %v333
  %338 = vst [vmem:[#allocation2 + $0xf0] sm:$0xff] %v334
  %339 = vst [vmem:[#allocation2 + $0xf8] sm:$0xff] %v335
  %340 = vrot.lane.b32.xlu0 %v22, 111
  %v341 = vpop.permute.xlu0 %340
  %342 = vrot.lane.b32.xlu0 %v23, 111
  %v343 = vpop.permute.xlu0 %342
  %344 = vrot.lane.b32.xlu0 %v25, 111
  %v345 = vpop.permute.xlu0 %344
  %346 = vrot.lane.b32.xlu0 %v26, 111
  %v347 = vpop.permute.xlu0 %346
  %vm348 = vcmp.lt.s32.totalorder %v36, 111
  %v349 = vsel %vm348, %v345, %v347
  %v350 = vsel %vm348, %v343, %v345
  %v351 = vsel %vm348, %v341, %v343
  %v352 = vsel %vm348, %v347, %v341
  %s353 = scalar_lea.vmem %s2, 32
  %v354 = vld [vmem:[%s353] ss:$8 sm:$0xf]
  %v356 = vlaneseq
  %v357 = vshrl.u32 %v356, 7
  %v358 = vsub.s32 0, %v357
  %v359 = vrot.slane %v354, %v358
  %v360 = vlaneseq
  %v361 = vshrl.u32 %v360, 7
  %v362 = vsub.s32 1, %v361
  %v363 = vrot.slane %v354, %v362
  %v364 = vlaneseq
  %v365 = vshrl.u32 %v364, 7
  %v366 = vsub.s32 2, %v365
  %v367 = vrot.slane %v354, %v366
  %v368 = vlaneseq
  %v369 = vshrl.u32 %v368, 7
  %v370 = vsub.s32 3, %v369
  %v371 = vrot.slane %v354, %v370
  %v376 = vmul.f32 %v351, %v359
  %v377 = vmul.f32 %v350, %v363
  %v378 = vmul.f32 %v349, %v367
  %v379 = vmul.f32 %v352, %v371
  %380 = vst [vmem:[#allocation2 + $0x100] sm:$0xff] %v376
  %381 = vst [vmem:[#allocation2 + $0x108] sm:$0xff] %v377
  %382 = vst [vmem:[#allocation2 + $0x110] sm:$0xff] %v378
  %383 = vst [vmem:[#allocation2 + $0x118] sm:$0xff] %v379
  %v384 = vld [vmem:[%s1] sm:$0xf]
  %v385 = vld [vmem:[#allocation2] sm:$0xff]
  %v386 = vld [vmem:[#allocation2 + $0x8] sm:$0xff]
  %v387 = vld [vmem:[#allocation2 + $0x10] sm:$0xff]
  %v388 = vld [vmem:[#allocation2 + $0x18] sm:$0xff]
  %v389 = vld [vmem:[#allocation2 + $0x20] sm:$0xff]
  %v390 = vld [vmem:[#allocation2 + $0x28] sm:$0xff]
  %v391 = vld [vmem:[#allocation2 + $0x30] sm:$0xff]
  %v392 = vld [vmem:[#allocation2 + $0x38] sm:$0xff]
  %v393 = vld [vmem:[#allocation2 + $0x40] sm:$0xff]
  %v394 = vld [vmem:[#allocation2 + $0x48] sm:$0xff]
  %v395 = vld [vmem:[#allocation2 + $0x50] sm:$0xff]
  %v396 = vld [vmem:[#allocation2 + $0x58] sm:$0xff]
  %v397 = vld [vmem:[#allocation2 + $0x60] sm:$0xff]
  %v398 = vld [vmem:[#allocation2 + $0x68] sm:$0xff]
  %v399 = vld [vmem:[#allocation2 + $0x70] sm:$0xff]
  %v400 = vld [vmem:[#allocation2 + $0x78] sm:$0xff]
  %v401 = vld [vmem:[#allocation2 + $0x80] sm:$0xff]
  %v402 = vld [vmem:[#allocation2 + $0x88] sm:$0xff]
  %v403 = vld [vmem:[#allocation2 + $0x90] sm:$0xff]
  %v404 = vld [vmem:[#allocation2 + $0x98] sm:$0xff]
  %v405 = vld [vmem:[#allocation2 + $0xa0] sm:$0xff]
  %v406 = vld [vmem:[#allocation2 + $0xa8] sm:$0xff]
  %v407 = vld [vmem:[#allocation2 + $0xb0] sm:$0xff]
  %v408 = vld [vmem:[#allocation2 + $0xb8] sm:$0xff]
  %v409 = vld [vmem:[#allocation2 + $0xc0] sm:$0xff]
  %v410 = vld [vmem:[#allocation2 + $0xc8] sm:$0xff]
  %v411 = vld [vmem:[#allocation2 + $0xd0] sm:$0xff]
  %v412 = vld [vmem:[#allocation2 + $0xd8] sm:$0xff]
  %v413 = vld [vmem:[#allocation2 + $0xe0] sm:$0xff]
  %v414 = vld [vmem:[#allocation2 + $0xe8] sm:$0xff]
  %v415 = vld [vmem:[#allocation2 + $0xf0] sm:$0xff]
  %v416 = vld [vmem:[#allocation2 + $0xf8] sm:$0xff]
  %v417 = vld [vmem:[#allocation2 + $0x100] sm:$0xff]
  %v418 = vld [vmem:[#allocation2 + $0x108] sm:$0xff]
  %v419 = vld [vmem:[#allocation2 + $0x110] sm:$0xff]
  %v420 = vld [vmem:[#allocation2 + $0x118] sm:$0xff]
  %v421 = vld [vmem:[#allocation2 + $0x120] sm:$0xff]
  %v422 = vld [vmem:[#allocation2 + $0x128] sm:$0xff]
  %v423 = vld [vmem:[#allocation2 + $0x130] sm:$0xff]
  %v424 = vld [vmem:[#allocation2 + $0x138] sm:$0xff]
  %v425 = vpack.c.bf16 %v389, %v385
  %v426 = vpack.c.bf16 %v390, %v386
  %v427 = vpack.c.bf16 %v391, %v387
  %v428 = vpack.c.bf16 %v392, %v388
  %v429 = vpack.c.bf16 %v397, %v393
  %v430 = vpack.c.bf16 %v398, %v394
  %v431 = vpack.c.bf16 %v399, %v395
  %v432 = vpack.c.bf16 %v400, %v396
  %v433 = vpack.c.bf16 %v405, %v401
  %v434 = vpack.c.bf16 %v406, %v402
  %v435 = vpack.c.bf16 %v407, %v403
  %v436 = vpack.c.bf16 %v408, %v404
  %v437 = vpack.c.bf16 %v413, %v409
  %v438 = vpack.c.bf16 %v414, %v410
  %v439 = vpack.c.bf16 %v415, %v411
  %v440 = vpack.c.bf16 %v416, %v412
  %v441 = vpack.c.bf16 %v421, %v417
  %v442 = vpack.c.bf16 %v422, %v418
  %v443 = vpack.c.bf16 %v423, %v419
  %v444 = vpack.c.bf16 %v424, %v420
  %vm445 = vcmask 654336
  %v447 = vsel %vm445, %v384, 0
  %449 = vmatprep.subr.bf16.mxu0 %v426
  %450 = vmatpush1.bf16.msra.mxu0 %v425
  %451 = vmatprep.subr.bf16.mxu0 %v430
  %452 = vmatpush1.bf16.msra.mxu0 %v429
  %453 = vmatprep.subr.bf16.mxu0 %v434
  %454 = vmatpush1.bf16.msra.mxu0 %v433
  %455 = vmatprep.subr.bf16.mxu0 %v438
  %456 = vmatpush1.bf16.msra.mxu0 %v437
  %457 = vmatprep.subr.bf16.mxu0 %v442
  %458 = vmatpush1.bf16.msra.mxu0 %v441
  %459 = vmatprep.subr.bf16.mxu0 0
  %460 = vmatpush1.bf16.msra.mxu0 0
  %461 = vmatprep.subr.bf16.mxu0 0
  %462 = vmatpush1.bf16.msra.mxu0 0
  %463 = vmatprep.subr.bf16.mxu0 0
  %464 = vmatpush1.bf16.msra.mxu0 0
  %465 = vmatprep.subr.bf16.mxu0 0
  %466 = vmatpush1.bf16.msra.mxu0 0
  %467 = vmatprep.subr.bf16.mxu0 0
  %468 = vmatpush1.bf16.msra.mxu0 0
  %469 = vmatprep.subr.bf16.mxu0 0
  %470 = vmatpush1.bf16.msra.mxu0 0
  %471 = vmatprep.subr.bf16.mxu0 0
  %472 = vmatpush1.bf16.msra.mxu0 0
  %473 = vmatprep.subr.bf16.mxu0 0
  %474 = vmatpush1.bf16.msra.mxu0 0
  %475 = vmatprep.subr.bf16.mxu0 0
  %476 = vmatpush1.bf16.msra.mxu0 0
  %477 = vmatprep.subr.bf16.mxu0 0
  %478 = vmatpush1.bf16.msra.mxu0 0
  %479 = vmatprep.subr.bf16.mxu0 0
  %480 = vmatpush1.bf16.msra.mxu0 0
  %481 = vmatprep.mubr.bf16.mxu0 0
  %482 = vmatmul.mubr.bf16.gmra.mrb[0].mxu0 %v447
  %v483 = vpop.f32.mrb[0].mxu0
  %v484 = vadd.f32 0.0, %v483
  %v485 = vpop.f32.mrb[0].mxu0
  %v486 = vadd.f32 0.0, %v485
  %v487 = vpop.f32.mrb[0].mxu0
  %v488 = vpop.f32.mrb[0].mxu0
  %489 = vdwg.mxu0
  %490 = vmatprep.subr.bf16.mxu0 %v428
  %491 = vmatpush1.bf16.msra.mxu0 %v427
  %492 = vmatprep.subr.bf16.mxu0 %v432
  %493 = vmatpush1.bf16.msra.mxu0 %v431
  %494 = vmatprep.subr.bf16.mxu0 %v436
  %495 = vmatpush1.bf16.msra.mxu0 %v435
  %496 = vmatprep.subr.bf16.mxu0 %v440
  %497 = vmatpush1.bf16.msra.mxu0 %v439
  %498 = vmatprep.subr.bf16.mxu0 %v444
  %499 = vmatpush1.bf16.msra.mxu0 %v443
  %500 = vmatprep.subr.bf16.mxu0 0
  %501 = vmatpush1.bf16.msra.mxu0 0
  %502 = vmatprep.subr.bf16.mxu0 0
  %503 = vmatpush1.bf16.msra.mxu0 0
  %504 = vmatprep.subr.bf16.mxu0 0
  %505 = vmatpush1.bf16.msra.mxu0 0
  %506 = vmatprep.subr.bf16.mxu0 0
  %507 = vmatpush1.bf16.msra.mxu0 0
  %508 = vmatprep.subr.bf16.mxu0 0
  %509 = vmatpush1.bf16.msra.mxu0 0
  %510 = vmatprep.subr.bf16.mxu0 0
  %511 = vmatpush1.bf16.msra.mxu0 0
  %512 = vmatprep.subr.bf16.mxu0 0
  %513 = vmatpush1.bf16.msra.mxu0 0
  %514 = vmatprep.subr.bf16.mxu0 0
  %515 = vmatpush1.bf16.msra.mxu0 0
  %516 = vmatprep.subr.bf16.mxu0 0
  %517 = vmatpush1.bf16.msra.mxu0 0
  %518 = vmatprep.subr.bf16.mxu0 0
  %519 = vmatpush1.bf16.msra.mxu0 0
  %520 = vmatprep.subr.bf16.mxu0 0
  %521 = vmatpush1.bf16.msra.mxu0 0
  %522 = vmatprep.mubr.bf16.mxu0 0
  %523 = vmatmul.mubr.bf16.gmra.mrb[0].mxu0 %v447
  %v524 = vpop.f32.mrb[0].mxu0
  %v525 = vadd.f32 0.0, %v524
  %v526 = vpop.f32.mrb[0].mxu0
  %v527 = vadd.f32 0.0, %v526
  %v528 = vpop.f32.mrb[0].mxu0
  %v529 = vpop.f32.mrb[0].mxu0
  %530 = vdwg.mxu0
  %v531 = vld [vmem:[%s3] sm:$0xff]
  %v532 = vadd.f32 %v484, %v486
  %v533 = vadd.f32 %v532, %v525
  %v534 = vadd.f32 %v533, %v527
  %535 = vadd.xlane.f32.xlu0 %v534
  %v536 = vpop.xlane.xlu0 %535
  %v537 = vmul.f32 %v536, 0.001953125
  %v538 = vmul.f32 %v484, %v484
  %v539 = vmul.f32 %v486, %v486
  %v540 = vmul.f32 %v525, %v525
  %v541 = vmul.f32 %v527, %v527
  %v542 = vadd.f32 %v538, %v539
  %v543 = vadd.f32 %v542, %v540
  %v544 = vadd.f32 %v543, %v541
  %545 = vadd.xlane.f32.xlu0 %v544
  %v546 = vpop.xlane.xlu0 %545
  %v547 = vmul.f32 %v546, 0.001953125
  %v548 = vmul.f32 %v537, %v537
  %v549 = vsub.f32 %v547, %v548
  %v550 = vmax.f32 %v549, 0.0
  %v551 = vsub.f32 %v484, %v537
  %v552 = vsub.f32 %v486, %v537
  %v553 = vsub.f32 %v525, %v537
  %v554 = vsub.f32 %v527, %v537
  %v555 = vadd.f32 %v550, 1e-05
  %v556 = vrsqrt.pop %v555
  %v557 = vmul.f32 %v531, %v556
  %559 = vset.pattern.permute.xlu0 0
  %560 = vperm.xlu0 %559, %v557
  %v561 = vpop.permute.xlu0 %560
  %v563 = vmul.f32 %v551, %v561
  %v564 = vmul.f32 %v552, %v561
  %v565 = vmul.f32 %v553, %v561
  %v566 = vmul.f32 %v554, %v561
  %568 = vset.pattern.permute.xlu0 1
  %569 = vperm.xlu0 %568, %v531
  %v570 = vpop.permute.xlu0 %569
  %v572 = vadd.f32 %v563, %v570
  %v573 = vadd.f32 %v564, %v570
  %v574 = vadd.f32 %v565, %v570
  %v575 = vadd.f32 %v566, %v570
  %v576 = vmax.f32 %v572, 0.0
  %v577 = vmax.f32 %v573, 0.0
  %v578 = vmax.f32 %v574, 0.0
  %v579 = vmax.f32 %v575, 0.0
  %580 = vrot.lane.b32.xlu0 %v576, 17
  %v581 = vpop.permute.xlu0 %580
  %582 = vrot.lane.b32.xlu0 %v577, 17
  %v583 = vpop.permute.xlu0 %582
  %584 = vrot.lane.b32.xlu0 %v578, 17
  %v585 = vpop.permute.xlu0 %584
  %586 = vrot.lane.b32.xlu0 %v579, 17
  %v587 = vpop.permute.xlu0 %586
  %v588 = vsel %vm37, %v585, %v587
  %v589 = vsel %vm37, %v583, %v585
  %v590 = vsel %vm37, %v581, %v583
  %v591 = vsel %vm37, %v587, %v581
  %v592 = vld [vmem:[%s2] ss:$8 sm:$0xf]
  %v594 = vlaneseq
  %v595 = vshrl.u32 %v594, 7
  %v596 = vsub.s32 0, %v595
  %v597 = vrot.slane %v592, %v596
  %v598 = vlaneseq
  %v599 = vshrl.u32 %v598, 7
  %v600 = vsub.s32 1, %v599
  %v601 = vrot.slane %v592, %v600
  %v602 = vlaneseq
  %v603 = vshrl.u32 %v602, 7
  %v604 = vsub.s32 2, %v603
  %v605 = vrot.slane %v592, %v604
  %v606 = vlaneseq
  %v607 = vshrl.u32 %v606, 7
  %v608 = vsub.s32 3, %v607
  %v609 = vrot.slane %v592, %v608
  %v614 = vmul.f32 %v591, %v597
  %v615 = vmul.f32 %v590, %v601
  %v616 = vmul.f32 %v589, %v605
  %v617 = vmul.f32 %v588, %v609
  %618 = vst [vmem:[#allocation2] sm:$0xff] %v614
  %619 = vst [vmem:[#allocation2 + $0x8] sm:$0xff] %v615
  %620 = vst [vmem:[#allocation2 + $0x10] sm:$0xff] %v616
  %621 = vst [vmem:[#allocation2 + $0x18] sm:$0xff] %v617
  %622 = vrot.lane.b32.xlu0 %v576, 16
  %v623 = vpop.permute.xlu0 %622
  %624 = vrot.lane.b32.xlu0 %v577, 16
  %v625 = vpop.permute.xlu0 %624
  %626 = vrot.lane.b32.xlu0 %v578, 16
  %v627 = vpop.permute.xlu0 %626
  %628 = vrot.lane.b32.xlu0 %v579, 16
  %v629 = vpop.permute.xlu0 %628
  %v630 = vsel %vm80, %v627, %v629
  %v631 = vsel %vm80, %v625, %v627
  %v632 = vsel %vm80, %v623, %v625
  %v633 = vsel %vm80, %v629, %v623
  %v634 = vld [vmem:[%s85] ss:$8 sm:$0xf]
  %v636 = vlaneseq
  %v637 = vshrl.u32 %v636, 7
  %v638 = vsub.s32 0, %v637
  %v639 = vrot.slane %v634, %v638
  %v640 = vlaneseq
  %v641 = vshrl.u32 %v640, 7
  %v642 = vsub.s32 1, %v641
  %v643 = vrot.slane %v634, %v642
  %v644 = vlaneseq
  %v645 = vshrl.u32 %v644, 7
  %v646 = vsub.s32 2, %v645
  %v647 = vrot.slane %v634, %v646
  %v648 = vlaneseq
  %v649 = vshrl.u32 %v648, 7
  %v650 = vsub.s32 3, %v649
  %v651 = vrot.slane %v634, %v650
  %v656 = vmul.f32 %v633, %v639
  %v657 = vmul.f32 %v632, %v643
  %v658 = vmul.f32 %v631, %v647
  %v659 = vmul.f32 %v630, %v651
  %660 = vst [vmem:[#allocation2 + $0x20] sm:$0xff] %v656
  %661 = vst [vmem:[#allocation2 + $0x28] sm:$0xff] %v657
  %662 = vst [vmem:[#allocation2 + $0x30] sm:$0xff] %v658
  %663 = vst [vmem:[#allocation2 + $0x38] sm:$0xff] %v659
  %664 = vrot.lane.b32.xlu0 %v576, 15
  %v665 = vpop.permute.xlu0 %664
  %666 = vrot.lane.b32.xlu0 %v577, 15
  %v667 = vpop.permute.xlu0 %666
  %668 = vrot.lane.b32.xlu0 %v578, 15
  %v669 = vpop.permute.xlu0 %668
  %670 = vrot.lane.b32.xlu0 %v579, 15
  %v671 = vpop.permute.xlu0 %670
  %v672 = vsel %vm124, %v669, %v671
  %v673 = vsel %vm124, %v667, %v669
  %v674 = vsel %vm124, %v665, %v667
  %v675 = vsel %vm124, %v671, %v665
  %v676 = vld [vmem:[%s129] ss:$8 sm:$0xf]
  %v678 = vlaneseq
  %v679 = vshrl.u32 %v678, 7
  %v680 = vsub.s32 0, %v679
  %v681 = vrot.slane %v676, %v680
  %v682 = vlaneseq
  %v683 = vshrl.u32 %v682, 7
  %v684 = vsub.s32 1, %v683
  %v685 = vrot.slane %v676, %v684
  %v686 = vlaneseq
  %v687 = vshrl.u32 %v686, 7
  %v688 = vsub.s32 2, %v687
  %v689 = vrot.slane %v676, %v688
  %v690 = vlaneseq
  %v691 = vshrl.u32 %v690, 7
  %v692 = vsub.s32 3, %v691
  %v693 = vrot.slane %v676, %v692
  %v698 = vmul.f32 %v675, %v681
  %v699 = vmul.f32 %v674, %v685
  %v700 = vmul.f32 %v673, %v689
  %v701 = vmul.f32 %v672, %v693
  %702 = vst [vmem:[#allocation2 + $0x40] sm:$0xff] %v698
  %703 = vst [vmem:[#allocation2 + $0x48] sm:$0xff] %v699
  %704 = vst [vmem:[#allocation2 + $0x50] sm:$0xff] %v700
  %705 = vst [vmem:[#allocation2 + $0x58] sm:$0xff] %v701
  %706 = vrot.lane.b32.xlu0 %v576, 1
  %v707 = vpop.permute.xlu0 %706
  %708 = vrot.lane.b32.xlu0 %v577, 1
  %v709 = vpop.permute.xlu0 %708
  %710 = vrot.lane.b32.xlu0 %v578, 1
  %v711 = vpop.permute.xlu0 %710
  %712 = vrot.lane.b32.xlu0 %v579, 1
  %v713 = vpop.permute.xlu0 %712
  %v714 = vsel %vm168, %v711, %v713
  %v715 = vsel %vm168, %v709, %v711
  %v716 = vsel %vm168, %v707, %v709
  %v717 = vsel %vm168, %v713, %v707
  %v718 = vld [vmem:[%s173] ss:$8 sm:$0xf]
  %v720 = vlaneseq
  %v721 = vshrl.u32 %v720, 7
  %v722 = vsub.s32 0, %v721
  %v723 = vrot.slane %v718, %v722
  %v724 = vlaneseq
  %v725 = vshrl.u32 %v724, 7
  %v726 = vsub.s32 1, %v725
  %v727 = vrot.slane %v718, %v726
  %v728 = vlaneseq
  %v729 = vshrl.u32 %v728, 7
  %v730 = vsub.s32 2, %v729
  %v731 = vrot.slane %v718, %v730
  %v732 = vlaneseq
  %v733 = vshrl.u32 %v732, 7
  %v734 = vsub.s32 3, %v733
  %v735 = vrot.slane %v718, %v734
  %v740 = vmul.f32 %v717, %v723
  %v741 = vmul.f32 %v716, %v727
  %v742 = vmul.f32 %v715, %v731
  %v743 = vmul.f32 %v714, %v735
  %744 = vst [vmem:[#allocation2 + $0x60] sm:$0xff] %v740
  %745 = vst [vmem:[#allocation2 + $0x68] sm:$0xff] %v741
  %746 = vst [vmem:[#allocation2 + $0x70] sm:$0xff] %v742
  %747 = vst [vmem:[#allocation2 + $0x78] sm:$0xff] %v743
  %748 = vst [vmem:[#allocation2 + $0x80] sm:$0xff] %v576
  %749 = vst [vmem:[#allocation2 + $0x88] sm:$0xff] %v577
  %750 = vst [vmem:[#allocation2 + $0x90] sm:$0xff] %v578
  %751 = vst [vmem:[#allocation2 + $0x98] sm:$0xff] %v579
  %752 = vrot.lane.b32.xlu0 %v576, 127
  %v753 = vpop.permute.xlu0 %752
  %754 = vrot.lane.b32.xlu0 %v577, 127
  %v755 = vpop.permute.xlu0 %754
  %756 = vrot.lane.b32.xlu0 %v578, 127
  %v757 = vpop.permute.xlu0 %756
  %758 = vrot.lane.b32.xlu0 %v579, 127
  %v759 = vpop.permute.xlu0 %758
  %v760 = vsel %vm216, %v757, %v759
  %v761 = vsel %vm216, %v755, %v757
  %v762 = vsel %vm216, %v753, %v755
  %v763 = vsel %vm216, %v759, %v753
  %v764 = vld [vmem:[%s221] ss:$8 sm:$0xf]
  %v766 = vlaneseq
  %v767 = vshrl.u32 %v766, 7
  %v768 = vsub.s32 0, %v767
  %v769 = vrot.slane %v764, %v768
  %v770 = vlaneseq
  %v771 = vshrl.u32 %v770, 7
  %v772 = vsub.s32 1, %v771
  %v773 = vrot.slane %v764, %v772
  %v774 = vlaneseq
  %v775 = vshrl.u32 %v774, 7
  %v776 = vsub.s32 2, %v775
  %v777 = vrot.slane %v764, %v776
  %v778 = vlaneseq
  %v779 = vshrl.u32 %v778, 7
  %v780 = vsub.s32 3, %v779
  %v781 = vrot.slane %v764, %v780
  %v786 = vmul.f32 %v762, %v769
  %v787 = vmul.f32 %v761, %v773
  %v788 = vmul.f32 %v760, %v777
  %v789 = vmul.f32 %v763, %v781
  %790 = vst [vmem:[#allocation2 + $0xa0] sm:$0xff] %v786
  %791 = vst [vmem:[#allocation2 + $0xa8] sm:$0xff] %v787
  %792 = vst [vmem:[#allocation2 + $0xb0] sm:$0xff] %v788
  %793 = vst [vmem:[#allocation2 + $0xb8] sm:$0xff] %v789
  %794 = vrot.lane.b32.xlu0 %v576, 113
  %v795 = vpop.permute.xlu0 %794
  %796 = vrot.lane.b32.xlu0 %v577, 113
  %v797 = vpop.permute.xlu0 %796
  %798 = vrot.lane.b32.xlu0 %v578, 113
  %v799 = vpop.permute.xlu0 %798
  %800 = vrot.lane.b32.xlu0 %v579, 113
  %v801 = vpop.permute.xlu0 %800
  %v802 = vsel %vm260, %v799, %v801
  %v803 = vsel %vm260, %v797, %v799
  %v804 = vsel %vm260, %v795, %v797
  %v805 = vsel %vm260, %v801, %v795
  %v806 = vld [vmem:[%s265] ss:$8 sm:$0xf]
  %v808 = vlaneseq
  %v809 = vshrl.u32 %v808, 7
  %v810 = vsub.s32 0, %v809
  %v811 = vrot.slane %v806, %v810
  %v812 = vlaneseq
  %v813 = vshrl.u32 %v812, 7
  %v814 = vsub.s32 1, %v813
  %v815 = vrot.slane %v806, %v814
  %v816 = vlaneseq
  %v817 = vshrl.u32 %v816, 7
  %v818 = vsub.s32 2, %v817
  %v819 = vrot.slane %v806, %v818
  %v820 = vlaneseq
  %v821 = vshrl.u32 %v820, 7
  %v822 = vsub.s32 3, %v821
  %v823 = vrot.slane %v806, %v822
  %v828 = vmul.f32 %v804, %v811
  %v829 = vmul.f32 %v803, %v815
  %v830 = vmul.f32 %v802, %v819
  %v831 = vmul.f32 %v805, %v823
  %832 = vst [vmem:[#allocation2 + $0xc0] sm:$0xff] %v828
  %833 = vst [vmem:[#allocation2 + $0xc8] sm:$0xff] %v829
  %834 = vst [vmem:[#allocation2 + $0xd0] sm:$0xff] %v830
  %835 = vst [vmem:[#allocation2 + $0xd8] sm:$0xff] %v831
  %836 = vrot.lane.b32.xlu0 %v576, 112
  %v837 = vpop.permute.xlu0 %836
  %838 = vrot.lane.b32.xlu0 %v577, 112
  %v839 = vpop.permute.xlu0 %838
  %840 = vrot.lane.b32.xlu0 %v578, 112
  %v841 = vpop.permute.xlu0 %840
  %842 = vrot.lane.b32.xlu0 %v579, 112
  %v843 = vpop.permute.xlu0 %842
  %v844 = vsel %vm304, %v841, %v843
  %v845 = vsel %vm304, %v839, %v841
  %v846 = vsel %vm304, %v837, %v839
  %v847 = vsel %vm304, %v843, %v837
  %v848 = vld [vmem:[%s309] ss:$8 sm:$0xf]
  %v850 = vlaneseq
  %v851 = vshrl.u32 %v850, 7
  %v852 = vsub.s32 0, %v851
  %v853 = vrot.slane %v848, %v852
  %v854 = vlaneseq
  %v855 = vshrl.u32 %v854, 7
  %v856 = vsub.s32 1, %v855
  %v857 = vrot.slane %v848, %v856
  %v858 = vlaneseq
  %v859 = vshrl.u32 %v858, 7
  %v860 = vsub.s32 2, %v859
  %v861 = vrot.slane %v848, %v860
  %v862 = vlaneseq
  %v863 = vshrl.u32 %v862, 7
  %v864 = vsub.s32 3, %v863
  %v865 = vrot.slane %v848, %v864
  %v870 = vmul.f32 %v846, %v853
  %v871 = vmul.f32 %v845, %v857
  %v872 = vmul.f32 %v844, %v861
  %v873 = vmul.f32 %v847, %v865
  %874 = vst [vmem:[#allocation2 + $0xe0] sm:$0xff] %v870
  %875 = vst [vmem:[#allocation2 + $0xe8] sm:$0xff] %v871
  %876 = vst [vmem:[#allocation2 + $0xf0] sm:$0xff] %v872
  %877 = vst [vmem:[#allocation2 + $0xf8] sm:$0xff] %v873
  %878 = vrot.lane.b32.xlu0 %v576, 111
  %v879 = vpop.permute.xlu0 %878
  %880 = vrot.lane.b32.xlu0 %v577, 111
  %v881 = vpop.permute.xlu0 %880
  %882 = vrot.lane.b32.xlu0 %v578, 111
  %v883 = vpop.permute.xlu0 %882
  %884 = vrot.lane.b32.xlu0 %v579, 111
  %v885 = vpop.permute.xlu0 %884
  %v886 = vsel %vm348, %v883, %v885
  %v887 = vsel %vm348, %v881, %v883
  %v888 = vsel %vm348, %v879, %v881
  %v889 = vsel %vm348, %v885, %v879
  %v890 = vld [vmem:[%s353] ss:$8 sm:$0xf]
  %v892 = vlaneseq
  %v893 = vshrl.u32 %v892, 7
  %v894 = vsub.s32 0, %v893
  %v895 = vrot.slane %v890, %v894
  %v896 = vlaneseq
  %v897 = vshrl.u32 %v896, 7
  %v898 = vsub.s32 1, %v897
  %v899 = vrot.slane %v890, %v898
  %v900 = vlaneseq
  %v901 = vshrl.u32 %v900, 7
  %v902 = vsub.s32 2, %v901
  %v903 = vrot.slane %v890, %v902
  %v904 = vlaneseq
  %v905 = vshrl.u32 %v904, 7
  %v906 = vsub.s32 3, %v905
  %v907 = vrot.slane %v890, %v906
  %v912 = vmul.f32 %v888, %v895
  %v913 = vmul.f32 %v887, %v899
  %v914 = vmul.f32 %v886, %v903
  %v915 = vmul.f32 %v889, %v907
  %916 = vst [vmem:[#allocation2 + $0x100] sm:$0xff] %v912
  %917 = vst [vmem:[#allocation2 + $0x108] sm:$0xff] %v913
  %918 = vst [vmem:[#allocation2 + $0x110] sm:$0xff] %v914
  %919 = vst [vmem:[#allocation2 + $0x118] sm:$0xff] %v915
  %s920 = scalar_lea.vmem %s1, 4
  %v921 = vld [vmem:[%s920] sm:$0xf]
  %v922 = vld [vmem:[#allocation2] sm:$0xff]
  %v923 = vld [vmem:[#allocation2 + $0x8] sm:$0xff]
  %v924 = vld [vmem:[#allocation2 + $0x10] sm:$0xff]
  %v925 = vld [vmem:[#allocation2 + $0x18] sm:$0xff]
  %v926 = vld [vmem:[#allocation2 + $0x20] sm:$0xff]
  %v927 = vld [vmem:[#allocation2 + $0x28] sm:$0xff]
  %v928 = vld [vmem:[#allocation2 + $0x30] sm:$0xff]
  %v929 = vld [vmem:[#allocation2 + $0x38] sm:$0xff]
  %v930 = vld [vmem:[#allocation2 + $0x40] sm:$0xff]
  %v931 = vld [vmem:[#allocation2 + $0x48] sm:$0xff]
  %v932 = vld [vmem:[#allocation2 + $0x50] sm:$0xff]
  %v933 = vld [vmem:[#allocation2 + $0x58] sm:$0xff]
  %v934 = vld [vmem:[#allocation2 + $0x60] sm:$0xff]
  %v935 = vld [vmem:[#allocation2 + $0x68] sm:$0xff]
  %v936 = vld [vmem:[#allocation2 + $0x70] sm:$0xff]
  %v937 = vld [vmem:[#allocation2 + $0x78] sm:$0xff]
  %v938 = vld [vmem:[#allocation2 + $0x80] sm:$0xff]
  %v939 = vld [vmem:[#allocation2 + $0x88] sm:$0xff]
  %v940 = vld [vmem:[#allocation2 + $0x90] sm:$0xff]
  %v941 = vld [vmem:[#allocation2 + $0x98] sm:$0xff]
  %v942 = vld [vmem:[#allocation2 + $0xa0] sm:$0xff]
  %v943 = vld [vmem:[#allocation2 + $0xa8] sm:$0xff]
  %v944 = vld [vmem:[#allocation2 + $0xb0] sm:$0xff]
  %v945 = vld [vmem:[#allocation2 + $0xb8] sm:$0xff]
  %v946 = vld [vmem:[#allocation2 + $0xc0] sm:$0xff]
  %v947 = vld [vmem:[#allocation2 + $0xc8] sm:$0xff]
  %v948 = vld [vmem:[#allocation2 + $0xd0] sm:$0xff]
  %v949 = vld [vmem:[#allocation2 + $0xd8] sm:$0xff]
  %v950 = vld [vmem:[#allocation2 + $0xe0] sm:$0xff]
  %v951 = vld [vmem:[#allocation2 + $0xe8] sm:$0xff]
  %v952 = vld [vmem:[#allocation2 + $0xf0] sm:$0xff]
  %v953 = vld [vmem:[#allocation2 + $0xf8] sm:$0xff]
  %v954 = vld [vmem:[#allocation2 + $0x100] sm:$0xff]
  %v955 = vld [vmem:[#allocation2 + $0x108] sm:$0xff]
  %v956 = vld [vmem:[#allocation2 + $0x110] sm:$0xff]
  %v957 = vld [vmem:[#allocation2 + $0x118] sm:$0xff]
  %v958 = vld [vmem:[#allocation2 + $0x120] sm:$0xff]
  %v959 = vld [vmem:[#allocation2 + $0x128] sm:$0xff]
  %v960 = vld [vmem:[#allocation2 + $0x130] sm:$0xff]
  %v961 = vld [vmem:[#allocation2 + $0x138] sm:$0xff]
  %v962 = vpack.c.bf16 %v926, %v922
  %v963 = vpack.c.bf16 %v927, %v923
  %v964 = vpack.c.bf16 %v928, %v924
  %v965 = vpack.c.bf16 %v929, %v925
  %v966 = vpack.c.bf16 %v934, %v930
  %v967 = vpack.c.bf16 %v935, %v931
  %v968 = vpack.c.bf16 %v936, %v932
  %v969 = vpack.c.bf16 %v937, %v933
  %v970 = vpack.c.bf16 %v942, %v938
  %v971 = vpack.c.bf16 %v943, %v939
  %v972 = vpack.c.bf16 %v944, %v940
  %v973 = vpack.c.bf16 %v945, %v941
  %v974 = vpack.c.bf16 %v950, %v946
  %v975 = vpack.c.bf16 %v951, %v947
  %v976 = vpack.c.bf16 %v952, %v948
  %v977 = vpack.c.bf16 %v953, %v949
  %v978 = vpack.c.bf16 %v958, %v954
  %v979 = vpack.c.bf16 %v959, %v955
  %v980 = vpack.c.bf16 %v960, %v956
  %v981 = vpack.c.bf16 %v961, %v957
  %v983 = vsel %vm445, %v921, 0
  %985 = vmatprep.subr.bf16.mxu0 %v963
  %986 = vmatpush1.bf16.msra.mxu0 %v962
  %987 = vmatprep.subr.bf16.mxu0 %v967
  %988 = vmatpush1.bf16.msra.mxu0 %v966
  %989 = vmatprep.subr.bf16.mxu0 %v971
  %990 = vmatpush1.bf16.msra.mxu0 %v970
  %991 = vmatprep.subr.bf16.mxu0 %v975
  %992 = vmatpush1.bf16.msra.mxu0 %v974
  %993 = vmatprep.subr.bf16.mxu0 %v979
  %994 = vmatpush1.bf16.msra.mxu0 %v978
  %995 = vmatprep.subr.bf16.mxu0 0
  %996 = vmatpush1.bf16.msra.mxu0 0
  %997 = vmatprep.subr.bf16.mxu0 0
  %998 = vmatpush1.bf16.msra.mxu0 0
  %999 = vmatprep.subr.bf16.mxu0 0
  %1000 = vmatpush1.bf16.msra.mxu0 0
  %1001 = vmatprep.subr.bf16.mxu0 0
  %1002 = vmatpush1.bf16.msra.mxu0 0
  %1003 = vmatprep.subr.bf16.mxu0 0
  %1004 = vmatpush1.bf16.msra.mxu0 0
  %1005 = vmatprep.subr.bf16.mxu0 0
  %1006 = vmatpush1.bf16.msra.mxu0 0
  %1007 = vmatprep.subr.bf16.mxu0 0
  %1008 = vmatpush1.bf16.msra.mxu0 0
  %1009 = vmatprep.subr.bf16.mxu0 0
  %1010 = vmatpush1.bf16.msra.mxu0 0
  %1011 = vmatprep.subr.bf16.mxu0 0
  %1012 = vmatpush1.bf16.msra.mxu0 0
  %1013 = vmatprep.subr.bf16.mxu0 0
  %1014 = vmatpush1.bf16.msra.mxu0 0
  %1015 = vmatprep.subr.bf16.mxu0 0
  %1016 = vmatpush1.bf16.msra.mxu0 0
  %1017 = vmatprep.mubr.bf16.mxu0 0
  %1018 = vmatmul.mubr.bf16.gmra.mrb[0].mxu0 %v983
  %v1019 = vpop.f32.mrb[0].mxu0
  %v1020 = vadd.f32 0.0, %v1019
  %v1021 = vpop.f32.mrb[0].mxu0
  %v1022 = vadd.f32 0.0, %v1021
  %v1023 = vpop.f32.mrb[0].mxu0
  %v1024 = vpop.f32.mrb[0].mxu0
  %1025 = vdwg.mxu0
  %1026 = vmatprep.subr.bf16.mxu0 %v965
  %1027 = vmatpush1.bf16.msra.mxu0 %v964
  %1028 = vmatprep.subr.bf16.mxu0 %v969
  %1029 = vmatpush1.bf16.msra.mxu0 %v968
  %1030 = vmatprep.subr.bf16.mxu0 %v973
  %1031 = vmatpush1.bf16.msra.mxu0 %v972
  %1032 = vmatprep.subr.bf16.mxu0 %v977
  %1033 = vmatpush1.bf16.msra.mxu0 %v976
  %1034 = vmatprep.subr.bf16.mxu0 %v981
  %1035 = vmatpush1.bf16.msra.mxu0 %v980
  %1036 = vmatprep.subr.bf16.mxu0 0
  %1037 = vmatpush1.bf16.msra.mxu0 0
  %1038 = vmatprep.subr.bf16.mxu0 0
  %1039 = vmatpush1.bf16.msra.mxu0 0
  %1040 = vmatprep.subr.bf16.mxu0 0
  %1041 = vmatpush1.bf16.msra.mxu0 0
  %1042 = vmatprep.subr.bf16.mxu0 0
  %1043 = vmatpush1.bf16.msra.mxu0 0
  %1044 = vmatprep.subr.bf16.mxu0 0
  %1045 = vmatpush1.bf16.msra.mxu0 0
  %1046 = vmatprep.subr.bf16.mxu0 0
  %1047 = vmatpush1.bf16.msra.mxu0 0
  %1048 = vmatprep.subr.bf16.mxu0 0
  %1049 = vmatpush1.bf16.msra.mxu0 0
  %1050 = vmatprep.subr.bf16.mxu0 0
  %1051 = vmatpush1.bf16.msra.mxu0 0
  %1052 = vmatprep.subr.bf16.mxu0 0
  %1053 = vmatpush1.bf16.msra.mxu0 0
  %1054 = vmatprep.subr.bf16.mxu0 0
  %1055 = vmatpush1.bf16.msra.mxu0 0
  %1056 = vmatprep.subr.bf16.mxu0 0
  %1057 = vmatpush1.bf16.msra.mxu0 0
  %1058 = vmatprep.mubr.bf16.mxu0 0
  %1059 = vmatmul.mubr.bf16.gmra.mrb[0].mxu0 %v983
  %v1060 = vpop.f32.mrb[0].mxu0
  %v1061 = vadd.f32 0.0, %v1060
  %v1062 = vpop.f32.mrb[0].mxu0
  %v1063 = vadd.f32 0.0, %v1062
  %v1064 = vpop.f32.mrb[0].mxu0
  %v1065 = vpop.f32.mrb[0].mxu0
  %1066 = vdwg.mxu0
  %v1067 = vld [vmem:[%s3] sm:$0xff]
  %v1068 = vadd.f32 %v1020, %v1022
  %v1069 = vadd.f32 %v1068, %v1061
  %v1070 = vadd.f32 %v1069, %v1063
  %1071 = vadd.xlane.f32.xlu0 %v1070
  %v1072 = vpop.xlane.xlu0 %1071
  %v1073 = vmul.f32 %v1072, 0.001953125
  %v1074 = vmul.f32 %v1020, %v1020
  %v1075 = vmul.f32 %v1022, %v1022
  %v1076 = vmul.f32 %v1061, %v1061
  %v1077 = vmul.f32 %v1063, %v1063
  %v1078 = vadd.f32 %v1074, %v1075
  %v1079 = vadd.f32 %v1078, %v1076
  %v1080 = vadd.f32 %v1079, %v1077
  %1081 = vadd.xlane.f32.xlu0 %v1080
  %v1082 = vpop.xlane.xlu0 %1081
  %v1083 = vmul.f32 %v1082, 0.001953125
  %v1084 = vmul.f32 %v1073, %v1073
  %v1085 = vsub.f32 %v1083, %v1084
  %v1086 = vmax.f32 %v1085, 0.0
  %v1087 = vsub.f32 %v1020, %v1073
  %v1088 = vsub.f32 %v1022, %v1073
  %v1089 = vsub.f32 %v1061, %v1073
  %v1090 = vsub.f32 %v1063, %v1073
  %v1091 = vadd.f32 %v1086, 1e-05
  %v1092 = vrsqrt.pop %v1091
  %v1093 = vmul.f32 %v1067, %v1092
  %1095 = vset.pattern.permute.xlu0 2
  %1096 = vperm.xlu0 %1095, %v1093
  %v1097 = vpop.permute.xlu0 %1096
  %v1099 = vmul.f32 %v1087, %v1097
  %v1100 = vmul.f32 %v1088, %v1097
  %v1101 = vmul.f32 %v1089, %v1097
  %v1102 = vmul.f32 %v1090, %v1097
  %1104 = vset.pattern.permute.xlu0 3
  %1105 = vperm.xlu0 %1104, %v1067
  %v1106 = vpop.permute.xlu0 %1105
  %v1108 = vadd.f32 %v1099, %v1106
  %v1109 = vadd.f32 %v1100, %v1106
  %v1110 = vadd.f32 %v1101, %v1106
  %v1111 = vadd.f32 %v1102, %v1106
  %v1112 = vld [vmem:[%s0] sm:$0xff]
  %v1113 = vld [vmem:[%s0 + $0x8] sm:$0xff]
  %v1114 = vadd.f32 %v1112, %v1108
  %v1115 = vadd.f32 %v1113, %v1109
  %v1116 = vmax.f32 %v1114, 0.0
  %v1117 = vmax.f32 %v1115, 0.0
  %1118 = vst [vmem:[%s4] sm:$0xff] %v1116
  %1119 = vst [vmem:[%s4 + $0x8] sm:$0xff] %v1117
  %v1120 = vld [vmem:[%s24] sm:$0xff]
  %v1121 = vld [vmem:[%s24 + $0x8] sm:$0xff]
  %v1122 = vadd.f32 %v1120, %v1110
  %v1123 = vadd.f32 %v1121, %v1111
  %v1124 = vmax.f32 %v1122, 0.0
  %v1125 = vmax.f32 %v1123, 0.0
  %s1126 = scalar_lea.vmem %s4, 16
  %1127 = vst [vmem:[%s1126] sm:$0xff] %v1124
  %1128 = vst [vmem:[%s1126 + $0x8] sm:$0xff] %v1125
  // Predicated region
  $region18: #{residual_forward.1} parent=0 // pred_check
    _
  $region19: #{residual_forward.1} parent=0 // pred_check_branch
    %1130 = sbr.rel (0) target = $region21
  $region20: #{residual_forward.1} parent=0 // pred_region
    _
  $region21: #{residual_forward.1} parent=0 // pred_fallthru
    _
  // Predicated region
  $region22: #{residual_forward.1} parent=0 // pred_check
    _
  $region23: #{residual_forward.1} parent=0 // pred_check_branch
    %1132 = sbr.rel (0) target = $region25
  $region24: #{residual_forward.1} parent=0 // pred_region
    _
  $region25: #{residual_forward.1} parent=0 // pred_fallthru
    _

</llo_original>
